<compile_context>
chip_gen: v6e
topology: v6e:2x2x1
jax: 0.10.0
libtpu: 0.0.40
codegen_flags: <defaults>
</compile_context>

<pallas_src>
import numpy as np
import jax
import jax.numpy as jnp
from jax import lax
from jax.experimental import pallas as pl
from jax.experimental.pallas import tpu as pltpu


def _round_up(x, m):
    return (x + m - 1) // m * m


def sentiment_kernel(emb_ref, wih_ref, whh_ref, b_ref,
                     wword_ref, bword_ref, wproj_ref,
                     wdec_ref, bdec_ref,
                     out_ref,
                     states_ref, pre_ref, h_ref, c_ref, m_ref, l_ref, ctx_ref):
    t_idx = pl.program_id(1)
    n_t = pl.num_programs(1)
    T_TILE, B, E = emb_ref.shape          # time steps per tile, padded batch chunk, padded E
    H = whh_ref.shape[0]                  # padded hidden size

    # ---- init recurrent carry + online-softmax state on the first T tile of a chunk ----
    @pl.when(t_idx == 0)
    def _():
        h_ref[...] = jnp.zeros_like(h_ref)
        c_ref[...] = jnp.zeros_like(c_ref)
        m_ref[...] = jnp.full(m_ref.shape, -1e30, dtype=jnp.float32)
        l_ref[...] = jnp.zeros_like(l_ref)
        ctx_ref[...] = jnp.zeros_like(ctx_ref)

    # ---- hoisted loads (once per grid step, not per time step) --------------
    w_hh = whh_ref[...]                   # (H, 4H) bf16

    # ---- input projection for the whole T tile: ONE MXU matmul (bf16 in, f32 acc) ----
    # Bias added here once; only h @ W_hh remains on the serial h->h chain.
    x_flat = emb_ref[...].reshape(T_TILE * B, E)
    pre_ref[...] = (jnp.dot(x_flat, wih_ref[...],
                            preferred_element_type=jnp.float32)
                    + b_ref[...])         # (T_TILE*B, 4H) f32

    # ---- LSTM recurrence (PyTorch gate order i, f, g, o), bounded unroll -----
    def step(tt, carry):
        h, c = carry
        row = pl.multiple_of(tt * B, 8)
        gates = pre_ref[pl.ds(row, B), :] + jnp.dot(
            h.astype(jnp.bfloat16), w_hh, preferred_element_type=jnp.float32)
        i_g = jax.nn.sigmoid(gates[:, 0:H])
        f_g = jax.nn.sigmoid(gates[:, H:2 * H])
        g_g = jnp.tanh(gates[:, 2 * H:3 * H])
        o_g = jax.nn.sigmoid(gates[:, 3 * H:4 * H])
        c_new = f_g * c + i_g * g_g
        h_new = o_g * jnp.tanh(c_new)
        states_ref[pl.ds(row, B), :] = h_new
        return (h_new, c_new)

    h, c = lax.fori_loop(0, T_TILE, step, (h_ref[...], c_ref[...]),
                         unroll=min(T_TILE, 8))
    h_ref[...] = h
    c_ref[...] = c

    # ---- online (flash-style) word attention over this tile's hidden states ----
    states = states_ref[...]                                        # (T_TILE*B, H) f32
    squish = jnp.tanh(
        jnp.dot(states.astype(jnp.bfloat16), wword_ref[...],
                preferred_element_type=jnp.float32)
        + bword_ref[...])                                           # (T_TILE*B, H) f32
    logits = jnp.sum(squish * wproj_ref[...], axis=-1,
                     keepdims=True).reshape(T_TILE, B, 1)           # (T_TILE, B, 1) f32
    m_old = m_ref[...]                                              # (B, 1)
    m_new = jnp.maximum(m_old, jnp.max(logits, axis=0))             # (B, 1)
    alpha = jnp.exp(m_old - m_new)                                  # (B, 1)
    p = jnp.exp(logits - m_new)                                     # (T_TILE, B, 1)
    l_ref[...] = alpha * l_ref[...] + jnp.sum(p, axis=0)            # (B, 1)
    ctx_ref[...] = alpha * ctx_ref[...] + jnp.sum(
        states.reshape(T_TILE, B, H) * p, axis=0)                   # (B, H)
    m_ref[...] = m_new

    # ---- decoder: only on the final T tile of this batch chunk ---------------
    @pl.when(t_idx == n_t - 1)
    def _():
        inv_l = pl.reciprocal(l_ref[...], approx=True)              # softmax denom >= 1
        ctx = ctx_ref[...] * inv_l                                  # (B, H) f32
        out = (jnp.dot(ctx.astype(jnp.bfloat16), wdec_ref[...],
                       preferred_element_type=jnp.float32)
               + bdec_ref[...])                                     # (B, L_pad) f32
        out_ref[...] = out[None]


def _pad_gated(w, rows_pad, H, H_pad):
    """Pad an LSTM (rows, 4H) matrix per-gate to (rows_pad, 4*H_pad)."""
    rows = w.shape[0]
    w4 = w.reshape(rows, 4, H)
    w4 = jnp.pad(w4, ((0, rows_pad - rows), (0, 0), (0, H_pad - H)))
    return w4.reshape(rows_pad, 4 * H_pad)


def _pad2(x, r, c):
    return jnp.pad(x, ((0, r - x.shape[0]), (0, c - x.shape[1])))


def sentiment_net_forward(inputs, emb_table, W_ih, W_hh, b,
                          W_word, bias_word, W_proj, W_dec, b_dec,
                          t_tile=None, b_tile=None):
    T, B = inputs.shape
    E = emb_table.shape[1]
    H = W_hh.shape[0]
    L = W_dec.shape[1]

    E_pad = _round_up(E, 128)
    H_pad = _round_up(H, 128)
    L_pad = _round_up(L, 128)

    # Batch chunking: >= 2 chunks whenever B > 8 so v7x's two TensorCores both get work
    # (a single chunk is just a serial loop of length 1 on v5e/v6e).
    if b_tile is None:
        b_tile = 8 if B <= 8 else _round_up((B + 1) // 2, 8)
    b_tile = _round_up(b_tile, 8)
    B_pad = _round_up(B, b_tile)
    n_b = B_pad // b_tile

    # T tiling: aim the hoisted input-projection matmul at M = t_tile*b_tile ~ 256 rows.
    if t_tile is None:
        target_t = max(1, 256 // b_tile)
        t_tile = max(d for d in range(1, T + 1) if T % d == 0 and d <= target_t)
    assert T % t_tile == 0
    n_t = T // t_tile

    # Embedding lookup (gather) + eval-mode dropout (identity) — plain JAX glue.
    # Gather from a pre-padded bf16 table so the streamed activation is half-width
    # and already lane-aligned.
    # TODO(synk): move this gather in-kernel (scalar-prefetched ids + pl.ANY table).
    emb_tab_p = jnp.pad(emb_table.astype(jnp.bfloat16), ((0, 0), (0, E_pad - E)))
    embedded = emb_tab_p[inputs]                                    # (T, B, E_pad) bf16
    embedded = jnp.pad(embedded, ((0, 0), (0, B_pad - B), (0, 0)))  # (T, B_pad, E_pad)

    # (8,128)-aligned parameters; padded rows/cols are zero so results are exact.
    W_ih_p = _pad_gated(W_ih, E_pad, H, H_pad).astype(jnp.bfloat16)
    W_hh_p = _pad_gated(W_hh, H_pad, H, H_pad).astype(jnp.bfloat16)
    b_p = _pad_gated(b, 1, H, H_pad)                                # f32
    W_word_p = _pad2(W_word, H_pad, H_pad).astype(jnp.bfloat16)
    bias_word_p = _pad2(bias_word, 1, H_pad)                        # f32
    W_proj_p = _pad2(W_proj, 1, H_pad)                              # f32
    W_dec_p = _pad2(W_dec, H_pad, L_pad).astype(jnp.bfloat16)
    b_dec_p = _pad2(b_dec, 1, L_pad)                                # f32

    # Grid-invariant weights: constant index_map -> never re-fetched -> single-buffer them.
    def const_spec(shape):
        nd = len(shape)
        return pl.BlockSpec(shape, lambda bi, ti: (0,) * nd,
                            pipeline_mode=pl.Buffered(1))

    # Explicit VMEM budget (double-buffered embedded tile + single-buffered weights +
    # scratch), with generous headroom; clamped to the smallest per-core VMEM (v7x 64 MiB).
    bf2, f4 = 2, 4
    n_rows = t_tile * b_tile
    vmem_need = (
        2 * n_rows * E_pad * bf2                                   # embedded tile (x2 bufs)
        + (E_pad * 4 * H_pad + H_pad * 4 * H_pad
           + H_pad * H_pad + H_pad * L_pad) * bf2                  # bf16 weights
        + (4 * H_pad + 2 * H_pad + 2 * L_pad) * f4                 # small f32 params
        + 2 * b_tile * L_pad * f4                                  # output block (x2 bufs)
        + n_rows * H_pad * f4                                      # per-tile states scratch
        + n_rows * 4 * H_pad * f4                                  # per-tile pre-gates
        + 4 * b_tile * H_pad * f4                                  # h, c, ctx (+ slack)
        + 2 * 8 * 128 * f4                                         # m, l (padded vregs)
    )
    vmem_bytes = int(min(max(2 * vmem_need + (4 << 20), 16 << 20), 64 << 20))

    out = pl.pallas_call(
        sentiment_kernel,
        out_shape=jax.ShapeDtypeStruct((1, B_pad, L_pad), jnp.float32),
        grid=(n_b, n_t),
        in_specs=[
            # embedded streams over (batch chunk, T tile): pipelined HBM->VMEM
            pl.BlockSpec((t_tile, b_tile, E_pad), lambda bi, ti: (ti, bi, 0)),
            const_spec((E_pad, 4 * H_pad)),        # W_ih   (bf16)
            const_spec((H_pad, 4 * H_pad)),        # W_hh   (bf16)
            const_spec((1, 4 * H_pad)),            # b = b_ih + b_hh (f32)
            const_spec((H_pad, H_pad)),            # W_word (bf16)
            const_spec((1, H_pad)),                # bias_word (f32)
            const_spec((1, H_pad)),                # W_proj (f32)
            const_spec((H_pad, L_pad)),            # W_dec  (bf16)
            const_spec((1, L_pad)),                # b_dec  (f32)
        ],
        out_specs=pl.BlockSpec((1, b_tile, L_pad), lambda bi, ti: (0, bi, 0)),
        scratch_shapes=[
            pltpu.VMEM((t_tile * b_tile, H_pad), jnp.float32),      # hidden states (per tile)
            pltpu.VMEM((t_tile * b_tile, 4 * H_pad), jnp.float32),  # pre-gates (per tile)
            pltpu.VMEM((b_tile, H_pad), jnp.float32),               # h carry
            pltpu.VMEM((b_tile, H_pad), jnp.float32),               # c carry
            pltpu.VMEM((b_tile, 1), jnp.float32),                   # running softmax max
            pltpu.VMEM((b_tile, 1), jnp.float32),                   # running softmax denom
            pltpu.VMEM((b_tile, H_pad), jnp.float32),               # running ctx accumulator
        ],
        compiler_params=pltpu.CompilerParams(
            dimension_semantics=("parallel", "arbitrary"),
            vmem_limit_bytes=vmem_bytes),
    )(embedded, W_ih_p, W_hh_p, b_p, W_word_p, bias_word_p, W_proj_p,
      W_dec_p, b_dec_p)

    return out[:, :B, :L]


def reference_forward(inputs, emb_table, W_ih, W_hh, b,
                      W_word, bias_word, W_proj, W_dec, b_dec):
    """Pure-JAX f32 reference of the PyTorch forward pass (eval mode)."""
    T, B = inputs.shape
    H = W_hh.shape[0]
    emb = emb_table[inputs].astype(jnp.float32)                 # (T, B, E)

    def step(carry, x_t):
        h, c = carry
        gates = x_t @ W_ih + h @ W_hh + b
        i = jax.nn.sigmoid(gates[:, 0:H])
        f = jax.nn.sigmoid(gates[:, H:2 * H])
        g = jnp.tanh(gates[:, 2 * H:3 * H])
        o = jax.nn.sigmoid(gates[:, 3 * H:4 * H])
        c = f * c + i * g
        h = o * jnp.tanh(c)
        return (h, c), h

    (_, _), states = lax.scan(
        step, (jnp.zeros((B, H), jnp.float32), jnp.zeros((B, H), jnp.float32)), emb)
    squish = jnp.tanh(states @ W_word + bias_word)              # (T, B, H)
    logits = jnp.sum(squish * W_proj, axis=-1)                  # (T, B)
    attn = jax.nn.softmax(logits, axis=0)
    ctx = jnp.sum(states * attn[:, :, None], axis=0)            # (B, H)
    return (ctx @ W_dec + b_dec)[None]                          # (1, B, L)


if __name__ == "__main__":
    key = jax.random.PRNGKey(0)
    keys = jax.random.split(key, 12)

    # Small, forward-consistent shapes.
    vocab_size, embed_size, num_hiddens, n_labels = 50, 32, 32, 2
    T, B = 16, 12
    pad_idx = 0

    # Embedding (padding row zeroed, like padding_idx=pad_idx).
    emb_table = 0.1 * jax.random.normal(keys[0], (vocab_size, embed_size), jnp.float32)
    emb_table = emb_table.at[pad_idx].set(0.0)

    # LSTM params (PyTorch default init U(-1/sqrt(H), 1/sqrt(H))), pre-transposed
    # so the kernel computes x @ W_ih + h @ W_hh.
    k = 1.0 / np.sqrt(num_hiddens)
    W_ih = jax.random.uniform(keys[1], (embed_size, 4 * num_hiddens), minval=-k, maxval=k)
    W_hh = jax.random.uniform(keys[2], (num_hiddens, 4 * num_hiddens), minval=-k, maxval=k)
    b_ih = jax.random.uniform(keys[3], (4 * num_hiddens,), minval=-k, maxval=k)
    b_hh = jax.random.uniform(keys[4], (4 * num_hiddens,), minval=-k, maxval=k)
    b = (b_ih + b_hh).reshape(1, 4 * num_hiddens)

    # Attention params (module init: uniform(-0.1, 0.1)).
    W_word = jax.random.uniform(keys[5], (num_hiddens, num_hiddens), minval=-0.1, maxval=0.1)
    bias_word = jax.random.uniform(keys[6], (1, num_hiddens), minval=-0.1, maxval=0.1)
    W_proj = jax.random.uniform(keys[7], (1, num_hiddens), minval=-0.1, maxval=0.1)

    # Decoder Linear(H, labels).
    kd = 1.0 / np.sqrt(num_hiddens)
    W_dec = jax.random.uniform(keys[8], (num_hiddens, n_labels), minval=-kd, maxval=kd)
    b_dec = jax.random.uniform(keys[9], (1, n_labels), minval=-kd, maxval=kd)

    # Inputs: (T, B) token ids, plus text_lengths (unused by the forward pass).
    inputs = jax.random.randint(keys[10], (T, B), 0, vocab_size, dtype=jnp.int32)
    text_lengths = jnp.full((B,), T, dtype=jnp.int32)  # unused, kept for parity

    # t_tile=4 -> T grid of 4 steps; B=12 -> 2 batch chunks of 8: exercises the streamed
    # online-attention accumulation AND the (parallel batch, arbitrary time) grid.
    out = sentiment_net_forward(inputs, emb_table, W_ih, W_hh, b,
                                W_word, bias_word, W_proj, W_dec, b_dec,
                                t_tile=4)
    jax.block_until_ready(out)
    assert out.shape == (1, B, n_labels)

    ref = reference_forward(inputs, emb_table, W_ih, W_hh, b,
                            W_word, bias_word, W_proj, W_dec, b_dec)
    # bf16 weights/activations in the kernel vs f32 reference -> loosened tolerance.
    np.testing.assert_allclose(np.asarray(out), np.asarray(ref), rtol=2e-2, atol=2e-2)

    print("KERNEL_OK")
</pallas_src>

<mosaic_0001>
module attributes {stable_mosaic.version = 11 : i64} {
  func.func @sentiment_kernel(%arg0: i32, %arg1: i32, %arg2: memref<4x8x128xbf16, #tpu.memory_space<vmem>>, %arg3: memref<128x512xbf16, #tpu.memory_space<vmem>>, %arg4: memref<128x512xbf16, #tpu.memory_space<vmem>>, %arg5: memref<1x512xf32, #tpu.memory_space<vmem>>, %arg6: memref<128x128xbf16, #tpu.memory_space<vmem>>, %arg7: memref<1x128xf32, #tpu.memory_space<vmem>>, %arg8: memref<1x128xf32, #tpu.memory_space<vmem>>, %arg9: memref<128x128xbf16, #tpu.memory_space<vmem>>, %arg10: memref<1x128xf32, #tpu.memory_space<vmem>>, %arg11: memref<1x8x128xf32, #tpu.memory_space<vmem>>, %arg12: memref<32x128xf32, #tpu.memory_space<vmem>>, %arg13: memref<32x512xf32, #tpu.memory_space<vmem>>, %arg14: memref<8x128xf32, #tpu.memory_space<vmem>>, %arg15: memref<8x128xf32, #tpu.memory_space<vmem>>, %arg16: memref<8x1xf32, #tpu.memory_space<vmem>>, %arg17: memref<8x1xf32, #tpu.memory_space<vmem>>, %arg18: memref<8x128xf32, #tpu.memory_space<vmem>>) attributes {dimension_semantics = [#tpu.dimension_semantics<parallel>, #tpu.dimension_semantics<arbitrary>], iteration_bounds = array<i64: 2, 4>, scalar_prefetch = 0 : i64, scratch_operands = 7 : i64, tpu.core_type = #tpu.core_type<tc>, window_params = [{transform_indices = @transform_0, window_bounds = array<i64: 4, 8, 128>}, {pipeline_mode = #tpu.pipeline_mode<synchronous>, transform_indices = @transform_1, window_bounds = array<i64: 128, 512>}, {pipeline_mode = #tpu.pipeline_mode<synchronous>, transform_indices = @transform_2, window_bounds = array<i64: 128, 512>}, {pipeline_mode = #tpu.pipeline_mode<synchronous>, transform_indices = @transform_3, window_bounds = array<i64: 1, 512>}, {pipeline_mode = #tpu.pipeline_mode<synchronous>, transform_indices = @transform_4, window_bounds = array<i64: 128, 128>}, {pipeline_mode = #tpu.pipeline_mode<synchronous>, transform_indices = @transform_5, window_bounds = array<i64: 1, 128>}, {pipeline_mode = #tpu.pipeline_mode<synchronous>, transform_indices = @transform_6, window_bounds = array<i64: 1, 128>}, {pipeline_mode = #tpu.pipeline_mode<synchronous>, transform_indices = @transform_7, window_bounds = array<i64: 128, 128>}, {pipeline_mode = #tpu.pipeline_mode<synchronous>, transform_indices = @transform_8, window_bounds = array<i64: 1, 128>}, {transform_indices = @transform_9, window_bounds = array<i64: 1, 8, 128>}]} {
    %c0_i32 = arith.constant 0 : i32
    %0 = arith.cmpi eq, %arg1, %c0_i32 : i32
    %1 = arith.extui %0 : i1 to i32
    %c0_i32_0 = arith.constant 0 : i32
    %2 = arith.cmpi ne, %1, %c0_i32_0 : i32
    scf.if %2 {
      %cst_74 = arith.constant 0.000000e+00 : f32
      %193 = vector.broadcast %cst_74 : f32 to vector<8x128xf32>
      %c0_75 = arith.constant 0 : index
      %c0_76 = arith.constant 0 : index
      %194 = vector.load %arg14[%c0_75, %c0_76] : memref<8x128xf32, #tpu.memory_space<vmem>>, vector<8x128xf32>
      tpu.vector_store %arg14[%c0_75, %c0_76], %193 {strides = array<i32>} : memref<8x128xf32, #tpu.memory_space<vmem>>, vector<8x128xf32>,
      %cst_77 = arith.constant 0.000000e+00 : f32
      %195 = vector.broadcast %cst_77 : f32 to vector<8x128xf32>
      %c0_78 = arith.constant 0 : index
      %c0_79 = arith.constant 0 : index
      %196 = vector.load %arg15[%c0_78, %c0_79] : memref<8x128xf32, #tpu.memory_space<vmem>>, vector<8x128xf32>
      tpu.vector_store %arg15[%c0_78, %c0_79], %195 {strides = array<i32>} : memref<8x128xf32, #tpu.memory_space<vmem>>, vector<8x128xf32>,
      %cst_80 = arith.constant -1.000000e+30 : f32
      %197 = vector.broadcast %cst_80 : f32 to vector<8x1xf32>
      %c0_81 = arith.constant 0 : index
      %c0_82 = arith.constant 0 : index
      %198 = vector.load %arg16[%c0_81, %c0_82] : memref<8x1xf32, #tpu.memory_space<vmem>>, vector<8x1xf32>
      tpu.vector_store %arg16[%c0_81, %c0_82], %197 {strides = array<i32>} : memref<8x1xf32, #tpu.memory_space<vmem>>, vector<8x1xf32>,
      %cst_83 = arith.constant 0.000000e+00 : f32
      %199 = vector.broadcast %cst_83 : f32 to vector<8x1xf32>
      %c0_84 = arith.constant 0 : index
      %c0_85 = arith.constant 0 : index
      %200 = vector.load %arg17[%c0_84, %c0_85] : memref<8x1xf32, #tpu.memory_space<vmem>>, vector<8x1xf32>
      tpu.vector_store %arg17[%c0_84, %c0_85], %199 {strides = array<i32>} : memref<8x1xf32, #tpu.memory_space<vmem>>, vector<8x1xf32>,
      %cst_86 = arith.constant 0.000000e+00 : f32
      %201 = vector.broadcast %cst_86 : f32 to vector<8x128xf32>
      %c0_87 = arith.constant 0 : index
      %c0_88 = arith.constant 0 : index
      %202 = vector.load %arg18[%c0_87, %c0_88] : memref<8x128xf32, #tpu.memory_space<vmem>>, vector<8x128xf32>
      tpu.vector_store %arg18[%c0_87, %c0_88], %201 {strides = array<i32>} : memref<8x128xf32, #tpu.memory_space<vmem>>, vector<8x128xf32>,
    } else {
    }
    %c0 = arith.constant 0 : index
    %c0_1 = arith.constant 0 : index
    %3 = vector.load %arg4[%c0, %c0_1] : memref<128x512xbf16, #tpu.memory_space<vmem>>, vector<128x512xbf16>
    %c0_2 = arith.constant 0 : index
    %c0_3 = arith.constant 0 : index
    %c0_4 = arith.constant 0 : index
    %4 = vector.load %arg2[%c0_2, %c0_3, %c0_4] : memref<4x8x128xbf16, #tpu.memory_space<vmem>>, vector<4x8x128xbf16>
    %5 = vector.shape_cast %4 : vector<4x8x128xbf16> to vector<32x128xbf16>
    %c0_5 = arith.constant 0 : index
    %c0_6 = arith.constant 0 : index
    %6 = vector.load %arg3[%c0_5, %c0_6] : memref<128x512xbf16, #tpu.memory_space<vmem>>, vector<128x512xbf16>
    %cst = arith.constant dense<0.000000e+00> : vector<32x512xf32>
    %7 = tpu.matmul %5, %6, %cst {dimension_numbers = #tpu.dot_dimension_numbers<[1], [0], [0], [1], [0, 0, 1, 1], [], []>} : vector<32x128xbf16>, vector<128x512xbf16>, vector<32x512xf32> -> vector<32x512xf32>
    %c0_7 = arith.constant 0 : index
    %c0_8 = arith.constant 0 : index
    %8 = vector.load %arg5[%c0_7, %c0_8] : memref<1x512xf32, #tpu.memory_space<vmem>>, vector<1x512xf32>
    %9 = vector.broadcast %8 : vector<1x512xf32> to vector<32x512xf32>
    %10 = arith.addf %7, %9 : vector<32x512xf32>
    %c0_9 = arith.constant 0 : index
    %c0_10 = arith.constant 0 : index
    %11 = vector.load %arg13[%c0_9, %c0_10] : memref<32x512xf32, #tpu.memory_space<vmem>>, vector<32x512xf32>
    tpu.vector_store %arg13[%c0_9, %c0_10], %10 {strides = array<i32>} : memref<32x512xf32, #tpu.memory_space<vmem>>, vector<32x512xf32>,
    %c0_11 = arith.constant 0 : index
    %c0_12 = arith.constant 0 : index
    %12 = vector.load %arg14[%c0_11, %c0_12] : memref<8x128xf32, #tpu.memory_space<vmem>>, vector<8x128xf32>
    %c0_13 = arith.constant 0 : index
    %c0_14 = arith.constant 0 : index
    %13 = vector.load %arg15[%c0_13, %c0_14] : memref<8x128xf32, #tpu.memory_space<vmem>>, vector<8x128xf32>
    %c0_i32_15 = arith.constant 0 : i32
    %c8_i32 = arith.constant 8 : i32
    %14 = arith.muli %c0_i32_15, %c8_i32 : i32
    %15 = tpu.assume_multiple %14, 8 : i32
    %16 = arith.index_cast %15 : i32 to index
    %c0_16 = arith.constant 0 : index
    %17 = vector.load %arg13[%16, %c0_16] : memref<32x512xf32, #tpu.memory_space<vmem>>, vector<8x512xf32>
    %18 = arith.truncf %12 : vector<8x128xf32> to vector<8x128xbf16>
    %cst_17 = arith.constant dense<0.000000e+00> : vector<8x512xf32>
    %19 = tpu.matmul %18, %3, %cst_17 {dimension_numbers = #tpu.dot_dimension_numbers<[1], [0], [0], [1], [0, 0, 1, 1], [], []>} : vector<8x128xbf16>, vector<128x512xbf16>, vector<8x512xf32> -> vector<8x512xf32>
    %20 = arith.addf %17, %19 : vector<8x512xf32>
    %21 = vector.extract_strided_slice %20 {offsets = [0, 0], sizes = [8, 128], strides = [1, 1]} : vector<8x512xf32> to vector<8x128xf32>
    %22 = arith.negf %21 : vector<8x128xf32>
    %23 = math.exp %22 : vector<8x128xf32>
    %cst_18 = arith.constant 1.000000e+00 : f32
    %24 = vector.broadcast %cst_18 : f32 to vector<8x128xf32>
    %25 = arith.addf %24, %23 : vector<8x128xf32>
    %26 = arith.divf %24, %25 : vector<8x128xf32>
    %27 = vector.extract_strided_slice %20 {offsets = [0, 128], sizes = [8, 128], strides = [1, 1]} : vector<8x512xf32> to vector<8x128xf32>
    %28 = arith.negf %27 : vector<8x128xf32>
    %29 = math.exp %28 : vector<8x128xf32>
    %cst_19 = arith.constant 1.000000e+00 : f32
    %30 = vector.broadcast %cst_19 : f32 to vector<8x128xf32>
    %31 = arith.addf %30, %29 : vector<8x128xf32>
    %32 = arith.divf %30, %31 : vector<8x128xf32>
    %33 = vector.extract_strided_slice %20 {offsets = [0, 256], sizes = [8, 128], strides = [1, 1]} : vector<8x512xf32> to vector<8x128xf32>
    %34 = math.tanh %33 : vector<8x128xf32>
    %35 = vector.extract_strided_slice %20 {offsets = [0, 384], sizes = [8, 128], strides = [1, 1]} : vector<8x512xf32> to vector<8x128xf32>
    %36 = arith.negf %35 : vector<8x128xf32>
    %37 = math.exp %36 : vector<8x128xf32>
    %cst_20 = arith.constant 1.000000e+00 : f32
    %38 = vector.broadcast %cst_20 : f32 to vector<8x128xf32>
    %39 = arith.addf %38, %37 : vector<8x128xf32>
    %40 = arith.divf %38, %39 : vector<8x128xf32>
    %41 = arith.mulf %32, %13 : vector<8x128xf32>
    %42 = arith.mulf %26, %34 : vector<8x128xf32>
    %43 = arith.addf %41, %42 : vector<8x128xf32>
    %44 = math.tanh %43 : vector<8x128xf32>
    %45 = arith.mulf %40, %44 : vector<8x128xf32>
    %46 = arith.index_cast %15 : i32 to index
    %c0_21 = arith.constant 0 : index
    %47 = vector.load %arg12[%46, %c0_21] : memref<32x128xf32, #tpu.memory_space<vmem>>, vector<8x128xf32>
    tpu.vector_store %arg12[%46, %c0_21], %45 {strides = array<i32>} : memref<32x128xf32, #tpu.memory_space<vmem>>, vector<8x128xf32>,
    %c1_i32 = arith.constant 1 : i32
    %c8_i32_22 = arith.constant 8 : i32
    %48 = arith.muli %c1_i32, %c8_i32_22 : i32
    %49 = tpu.assume_multiple %48, 8 : i32
    %50 = arith.index_cast %49 : i32 to index
    %c0_23 = arith.constant 0 : index
    %51 = vector.load %arg13[%50, %c0_23] : memref<32x512xf32, #tpu.memory_space<vmem>>, vector<8x512xf32>
    %52 = arith.truncf %45 : vector<8x128xf32> to vector<8x128xbf16>
    %cst_24 = arith.constant dense<0.000000e+00> : vector<8x512xf32>
    %53 = tpu.matmul %52, %3, %cst_24 {dimension_numbers = #tpu.dot_dimension_numbers<[1], [0], [0], [1], [0, 0, 1, 1], [], []>} : vector<8x128xbf16>, vector<128x512xbf16>, vector<8x512xf32> -> vector<8x512xf32>
    %54 = arith.addf %51, %53 : vector<8x512xf32>
    %55 = vector.extract_strided_slice %54 {offsets = [0, 0], sizes = [8, 128], strides = [1, 1]} : vector<8x512xf32> to vector<8x128xf32>
    %56 = arith.negf %55 : vector<8x128xf32>
    %57 = math.exp %56 : vector<8x128xf32>
    %cst_25 = arith.constant 1.000000e+00 : f32
    %58 = vector.broadcast %cst_25 : f32 to vector<8x128xf32>
    %59 = arith.addf %58, %57 : vector<8x128xf32>
    %60 = arith.divf %58, %59 : vector<8x128xf32>
    %61 = vector.extract_strided_slice %54 {offsets = [0, 128], sizes = [8, 128], strides = [1, 1]} : vector<8x512xf32> to vector<8x128xf32>
    %62 = arith.negf %61 : vector<8x128xf32>
    %63 = math.exp %62 : vector<8x128xf32>
    %cst_26 = arith.constant 1.000000e+00 : f32
    %64 = vector.broadcast %cst_26 : f32 to vector<8x128xf32>
    %65 = arith.addf %64, %63 : vector<8x128xf32>
    %66 = arith.divf %64, %65 : vector<8x128xf32>
    %67 = vector.extract_strided_slice %54 {offsets = [0, 256], sizes = [8, 128], strides = [1, 1]} : vector<8x512xf32> to vector<8x128xf32>
    %68 = math.tanh %67 : vector<8x128xf32>
    %69 = vector.extract_strided_slice %54 {offsets = [0, 384], sizes = [8, 128], strides = [1, 1]} : vector<8x512xf32> to vector<8x128xf32>
    %70 = arith.negf %69 : vector<8x128xf32>
    %71 = math.exp %70 : vector<8x128xf32>
    %cst_27 = arith.constant 1.000000e+00 : f32
    %72 = vector.broadcast %cst_27 : f32 to vector<8x128xf32>
    %73 = arith.addf %72, %71 : vector<8x128xf32>
    %74 = arith.divf %72, %73 : vector<8x128xf32>
    %75 = arith.mulf %66, %43 : vector<8x128xf32>
    %76 = arith.mulf %60, %68 : vector<8x128xf32>
    %77 = arith.addf %75, %76 : vector<8x128xf32>
    %78 = math.tanh %77 : vector<8x128xf32>
    %79 = arith.mulf %74, %78 : vector<8x128xf32>
    %80 = arith.index_cast %49 : i32 to index
    %c0_28 = arith.constant 0 : index
    %81 = vector.load %arg12[%80, %c0_28] : memref<32x128xf32, #tpu.memory_space<vmem>>, vector<8x128xf32>
    tpu.vector_store %arg12[%80, %c0_28], %79 {strides = array<i32>} : memref<32x128xf32, #tpu.memory_space<vmem>>, vector<8x128xf32>,
    %c2_i32 = arith.constant 2 : i32
    %c8_i32_29 = arith.constant 8 : i32
    %82 = arith.muli %c2_i32, %c8_i32_29 : i32
    %83 = tpu.assume_multiple %82, 8 : i32
    %84 = arith.index_cast %83 : i32 to index
    %c0_30 = arith.constant 0 : index
    %85 = vector.load %arg13[%84, %c0_30] : memref<32x512xf32, #tpu.memory_space<vmem>>, vector<8x512xf32>
    %86 = arith.truncf %79 : vector<8x128xf32> to vector<8x128xbf16>
    %cst_31 = arith.constant dense<0.000000e+00> : vector<8x512xf32>
    %87 = tpu.matmul %86, %3, %cst_31 {dimension_numbers = #tpu.dot_dimension_numbers<[1], [0], [0], [1], [0, 0, 1, 1], [], []>} : vector<8x128xbf16>, vector<128x512xbf16>, vector<8x512xf32> -> vector<8x512xf32>
    %88 = arith.addf %85, %87 : vector<8x512xf32>
    %89 = vector.extract_strided_slice %88 {offsets = [0, 0], sizes = [8, 128], strides = [1, 1]} : vector<8x512xf32> to vector<8x128xf32>
    %90 = arith.negf %89 : vector<8x128xf32>
    %91 = math.exp %90 : vector<8x128xf32>
    %cst_32 = arith.constant 1.000000e+00 : f32
    %92 = vector.broadcast %cst_32 : f32 to vector<8x128xf32>
    %93 = arith.addf %92, %91 : vector<8x128xf32>
    %94 = arith.divf %92, %93 : vector<8x128xf32>
    %95 = vector.extract_strided_slice %88 {offsets = [0, 128], sizes = [8, 128], strides = [1, 1]} : vector<8x512xf32> to vector<8x128xf32>
    %96 = arith.negf %95 : vector<8x128xf32>
    %97 = math.exp %96 : vector<8x128xf32>
    %cst_33 = arith.constant 1.000000e+00 : f32
    %98 = vector.broadcast %cst_33 : f32 to vector<8x128xf32>
    %99 = arith.addf %98, %97 : vector<8x128xf32>
    %100 = arith.divf %98, %99 : vector<8x128xf32>
    %101 = vector.extract_strided_slice %88 {offsets = [0, 256], sizes = [8, 128], strides = [1, 1]} : vector<8x512xf32> to vector<8x128xf32>
    %102 = math.tanh %101 : vector<8x128xf32>
    %103 = vector.extract_strided_slice %88 {offsets = [0, 384], sizes = [8, 128], strides = [1, 1]} : vector<8x512xf32> to vector<8x128xf32>
    %104 = arith.negf %103 : vector<8x128xf32>
    %105 = math.exp %104 : vector<8x128xf32>
    %cst_34 = arith.constant 1.000000e+00 : f32
    %106 = vector.broadcast %cst_34 : f32 to vector<8x128xf32>
    %107 = arith.addf %106, %105 : vector<8x128xf32>
    %108 = arith.divf %106, %107 : vector<8x128xf32>
    %109 = arith.mulf %100, %77 : vector<8x128xf32>
    %110 = arith.mulf %94, %102 : vector<8x128xf32>
    %111 = arith.addf %109, %110 : vector<8x128xf32>
    %112 = math.tanh %111 : vector<8x128xf32>
    %113 = arith.mulf %108, %112 : vector<8x128xf32>
    %114 = arith.index_cast %83 : i32 to index
    %c0_35 = arith.constant 0 : index
    %115 = vector.load %arg12[%114, %c0_35] : memref<32x128xf32, #tpu.memory_space<vmem>>, vector<8x128xf32>
    tpu.vector_store %arg12[%114, %c0_35], %113 {strides = array<i32>} : memref<32x128xf32, #tpu.memory_space<vmem>>, vector<8x128xf32>,
    %c3_i32 = arith.constant 3 : i32
    %c8_i32_36 = arith.constant 8 : i32
    %116 = arith.muli %c3_i32, %c8_i32_36 : i32
    %117 = tpu.assume_multiple %116, 8 : i32
    %118 = arith.index_cast %117 : i32 to index
    %c0_37 = arith.constant 0 : index
    %119 = vector.load %arg13[%118, %c0_37] : memref<32x512xf32, #tpu.memory_space<vmem>>, vector<8x512xf32>
    %120 = arith.truncf %113 : vector<8x128xf32> to vector<8x128xbf16>
    %cst_38 = arith.constant dense<0.000000e+00> : vector<8x512xf32>
    %121 = tpu.matmul %120, %3, %cst_38 {dimension_numbers = #tpu.dot_dimension_numbers<[1], [0], [0], [1], [0, 0, 1, 1], [], []>} : vector<8x128xbf16>, vector<128x512xbf16>, vector<8x512xf32> -> vector<8x512xf32>
    %122 = arith.addf %119, %121 : vector<8x512xf32>
    %123 = vector.extract_strided_slice %122 {offsets = [0, 0], sizes = [8, 128], strides = [1, 1]} : vector<8x512xf32> to vector<8x128xf32>
    %124 = arith.negf %123 : vector<8x128xf32>
    %125 = math.exp %124 : vector<8x128xf32>
    %cst_39 = arith.constant 1.000000e+00 : f32
    %126 = vector.broadcast %cst_39 : f32 to vector<8x128xf32>
    %127 = arith.addf %126, %125 : vector<8x128xf32>
    %128 = arith.divf %126, %127 : vector<8x128xf32>
    %129 = vector.extract_strided_slice %122 {offsets = [0, 128], sizes = [8, 128], strides = [1, 1]} : vector<8x512xf32> to vector<8x128xf32>
    %130 = arith.negf %129 : vector<8x128xf32>
    %131 = math.exp %130 : vector<8x128xf32>
    %cst_40 = arith.constant 1.000000e+00 : f32
    %132 = vector.broadcast %cst_40 : f32 to vector<8x128xf32>
    %133 = arith.addf %132, %131 : vector<8x128xf32>
    %134 = arith.divf %132, %133 : vector<8x128xf32>
    %135 = vector.extract_strided_slice %122 {offsets = [0, 256], sizes = [8, 128], strides = [1, 1]} : vector<8x512xf32> to vector<8x128xf32>
    %136 = math.tanh %135 : vector<8x128xf32>
    %137 = vector.extract_strided_slice %122 {offsets = [0, 384], sizes = [8, 128], strides = [1, 1]} : vector<8x512xf32> to vector<8x128xf32>
    %138 = arith.negf %137 : vector<8x128xf32>
    %139 = math.exp %138 : vector<8x128xf32>
    %cst_41 = arith.constant 1.000000e+00 : f32
    %140 = vector.broadcast %cst_41 : f32 to vector<8x128xf32>
    %141 = arith.addf %140, %139 : vector<8x128xf32>
    %142 = arith.divf %140, %141 : vector<8x128xf32>
    %143 = arith.mulf %134, %111 : vector<8x128xf32>
    %144 = arith.mulf %128, %136 : vector<8x128xf32>
    %145 = arith.addf %143, %144 : vector<8x128xf32>
    %146 = math.tanh %145 : vector<8x128xf32>
    %147 = arith.mulf %142, %146 : vector<8x128xf32>
    %148 = arith.index_cast %117 : i32 to index
    %c0_42 = arith.constant 0 : index
    %149 = vector.load %arg12[%148, %c0_42] : memref<32x128xf32, #tpu.memory_space<vmem>>, vector<8x128xf32>
    tpu.vector_store %arg12[%148, %c0_42], %147 {strides = array<i32>} : memref<32x128xf32, #tpu.memory_space<vmem>>, vector<8x128xf32>,
    %c4_i32 = arith.constant 4 : i32
    %c0_43 = arith.constant 0 : index
    %c0_44 = arith.constant 0 : index
    %150 = vector.load %arg14[%c0_43, %c0_44] : memref<8x128xf32, #tpu.memory_space<vmem>>, vector<8x128xf32>
    tpu.vector_store %arg14[%c0_43, %c0_44], %147 {strides = array<i32>} : memref<8x128xf32, #tpu.memory_space<vmem>>, vector<8x128xf32>,
    %c0_45 = arith.constant 0 : index
    %c0_46 = arith.constant 0 : index
    %151 = vector.load %arg15[%c0_45, %c0_46] : memref<8x128xf32, #tpu.memory_space<vmem>>, vector<8x128xf32>
    tpu.vector_store %arg15[%c0_45, %c0_46], %145 {strides = array<i32>} : memref<8x128xf32, #tpu.memory_space<vmem>>, vector<8x128xf32>,
    %c0_47 = arith.constant 0 : index
    %c0_48 = arith.constant 0 : index
    %152 = vector.load %arg12[%c0_47, %c0_48] : memref<32x128xf32, #tpu.memory_space<vmem>>, vector<32x128xf32>
    %153 = arith.truncf %152 : vector<32x128xf32> to vector<32x128xbf16>
    %c0_49 = arith.constant 0 : index
    %c0_50 = arith.constant 0 : index
    %154 = vector.load %arg6[%c0_49, %c0_50] : memref<128x128xbf16, #tpu.memory_space<vmem>>, vector<128x128xbf16>
    %cst_51 = arith.constant dense<0.000000e+00> : vector<32x128xf32>
    %155 = tpu.matmul %153, %154, %cst_51 {dimension_numbers = #tpu.dot_dimension_numbers<[1], [0], [0], [1], [0, 0, 1, 1], [], []>} : vector<32x128xbf16>, vector<128x128xbf16>, vector<32x128xf32> -> vector<32x128xf32>
    %c0_52 = arith.constant 0 : index
    %c0_53 = arith.constant 0 : index
    %156 = vector.load %arg7[%c0_52, %c0_53] : memref<1x128xf32, #tpu.memory_space<vmem>>, vector<1x128xf32>
    %157 = vector.broadcast %156 : vector<1x128xf32> to vector<32x128xf32>
    %158 = arith.addf %155, %157 : vector<32x128xf32>
    %159 = math.tanh %158 : vector<32x128xf32>
    %c0_54 = arith.constant 0 : index
    %c0_55 = arith.constant 0 : index
    %160 = vector.load %arg8[%c0_54, %c0_55] : memref<1x128xf32, #tpu.memory_space<vmem>>, vector<1x128xf32>
    %161 = vector.broadcast %160 : vector<1x128xf32> to vector<32x128xf32>
    %162 = arith.mulf %159, %161 : vector<32x128xf32>
    %cst_56 = arith.constant dense<0.000000e+00> : vector<32xf32>
    %163 = vector.multi_reduction <add>, %162, %cst_56 [1] : vector<32x128xf32> to vector<32xf32>
    %164 = vector.shape_cast %163 : vector<32xf32> to vector<32x1xf32>
    %165 = vector.shape_cast %164 : vector<32x1xf32> to vector<4x8x1xf32>
    %c0_57 = arith.constant 0 : index
    %c0_58 = arith.constant 0 : index
    %166 = vector.load %arg16[%c0_57, %c0_58] : memref<8x1xf32, #tpu.memory_space<vmem>>, vector<8x1xf32>
    %cst_59 = arith.constant dense<0xFF800000> : vector<8x1xf32>
    %167 = vector.multi_reduction <maximumf>, %165, %cst_59 [0] : vector<4x8x1xf32> to vector<8x1xf32>
    %168 = arith.maximumf %166, %167 : vector<8x1xf32>
    %169 = arith.subf %166, %168 : vector<8x1xf32>
    %170 = math.exp %169 : vector<8x1xf32>
    %171 = vector.shape_cast %168 : vector<8x1xf32> to vector<1x8x1xf32>
    %172 = vector.broadcast %171 : vector<1x8x1xf32> to vector<4x8x1xf32>
    %173 = arith.subf %165, %172 : vector<4x8x1xf32>
    %174 = math.exp %173 : vector<4x8x1xf32>
    %c0_60 = arith.constant 0 : index
    %c0_61 = arith.constant 0 : index
    %175 = vector.load %arg17[%c0_60, %c0_61] : memref<8x1xf32, #tpu.memory_space<vmem>>, vector<8x1xf32>
    %176 = arith.mulf %170, %175 : vector<8x1xf32>
    %cst_62 = arith.constant dense<0.000000e+00> : vector<8x1xf32>
    %177 = vector.multi_reduction <add>, %174, %cst_62 [0] : vector<4x8x1xf32> to vector<8x1xf32>
    %178 = arith.addf %176, %177 : vector<8x1xf32>
    %c0_63 = arith.constant 0 : index
    %c0_64 = arith.constant 0 : index
    %179 = vector.load %arg17[%c0_63, %c0_64] : memref<8x1xf32, #tpu.memory_space<vmem>>, vector<8x1xf32>
    tpu.vector_store %arg17[%c0_63, %c0_64], %178 {strides = array<i32>} : memref<8x1xf32, #tpu.memory_space<vmem>>, vector<8x1xf32>,
    %c0_65 = arith.constant 0 : index
    %c0_66 = arith.constant 0 : index
    %180 = vector.load %arg18[%c0_65, %c0_66] : memref<8x128xf32, #tpu.memory_space<vmem>>, vector<8x128xf32>
    %181 = vector.broadcast %170 : vector<8x1xf32> to vector<8x128xf32>
    %182 = arith.mulf %181, %180 : vector<8x128xf32>
    %183 = vector.shape_cast %152 : vector<32x128xf32> to vector<4x8x128xf32>
    %184 = vector.broadcast %174 : vector<4x8x1xf32> to vector<4x8x128xf32>
    %185 = arith.mulf %183, %184 : vector<4x8x128xf32>
    %cst_67 = arith.constant dense<0.000000e+00> : vector<8x128xf32>
    %186 = vector.multi_reduction <add>, %185, %cst_67 [0] : vector<4x8x128xf32> to vector<8x128xf32>
    %187 = arith.addf %182, %186 : vector<8x128xf32>
    %c0_68 = arith.constant 0 : index
    %c0_69 = arith.constant 0 : index
    %188 = vector.load %arg18[%c0_68, %c0_69] : memref<8x128xf32, #tpu.memory_space<vmem>>, vector<8x128xf32>
    tpu.vector_store %arg18[%c0_68, %c0_69], %187 {strides = array<i32>} : memref<8x128xf32, #tpu.memory_space<vmem>>, vector<8x128xf32>,
    %c0_70 = arith.constant 0 : index
    %c0_71 = arith.constant 0 : index
    %189 = vector.load %arg16[%c0_70, %c0_71] : memref<8x1xf32, #tpu.memory_space<vmem>>, vector<8x1xf32>
    tpu.vector_store %arg16[%c0_70, %c0_71], %168 {strides = array<i32>} : memref<8x1xf32, #tpu.memory_space<vmem>>, vector<8x1xf32>,
    %c3_i32_72 = arith.constant 3 : i32
    %190 = arith.cmpi eq, %arg1, %c3_i32_72 : i32
    %191 = arith.extui %190 : i1 to i32
    %c0_i32_73 = arith.constant 0 : i32
    %192 = arith.cmpi ne, %191, %c0_i32_73 : i32
    scf.if %192 {
      %c0_74 = arith.constant 0 : index
      %c0_75 = arith.constant 0 : index
      %193 = vector.load %arg17[%c0_74, %c0_75] : memref<8x1xf32, #tpu.memory_space<vmem>>, vector<8x1xf32>
      %194 = tpu.reciprocal %193 {approx = true} : vector<8x1xf32> -> vector<8x1xf32>
      %c0_76 = arith.constant 0 : index
      %c0_77 = arith.constant 0 : index
      %195 = vector.load %arg18[%c0_76, %c0_77] : memref<8x128xf32, #tpu.memory_space<vmem>>, vector<8x128xf32>
      %196 = vector.broadcast %194 : vector<8x1xf32> to vector<8x128xf32>
      %197 = arith.mulf %195, %196 : vector<8x128xf32>
      %198 = arith.truncf %197 : vector<8x128xf32> to vector<8x128xbf16>
      %c0_78 = arith.constant 0 : index
      %c0_79 = arith.constant 0 : index
      %199 = vector.load %arg9[%c0_78, %c0_79] : memref<128x128xbf16, #tpu.memory_space<vmem>>, vector<128x128xbf16>
      %cst_80 = arith.constant dense<0.000000e+00> : vector<8x128xf32>
      %200 = tpu.matmul %198, %199, %cst_80 {dimension_numbers = #tpu.dot_dimension_numbers<[1], [0], [0], [1], [0, 0, 1, 1], [], []>} : vector<8x128xbf16>, vector<128x128xbf16>, vector<8x128xf32> -> vector<8x128xf32>
      %c0_81 = arith.constant 0 : index
      %c0_82 = arith.constant 0 : index
      %201 = vector.load %arg10[%c0_81, %c0_82] : memref<1x128xf32, #tpu.memory_space<vmem>>, vector<1x128xf32>
      %202 = vector.broadcast %201 : vector<1x128xf32> to vector<8x128xf32>
      %203 = arith.addf %200, %202 : vector<8x128xf32>
      %204 = vector.shape_cast %203 : vector<8x128xf32> to vector<1x8x128xf32>
      %c0_83 = arith.constant 0 : index
      %c0_84 = arith.constant 0 : index
      %c0_85 = arith.constant 0 : index
      %205 = vector.load %arg11[%c0_83, %c0_84, %c0_85] : memref<1x8x128xf32, #tpu.memory_space<vmem>>, vector<1x8x128xf32>
      tpu.vector_store %arg11[%c0_83, %c0_84, %c0_85], %204 {strides = array<i32>} : memref<1x8x128xf32, #tpu.memory_space<vmem>>, vector<1x8x128xf32>,
    } else {
    }
    return
  }
  func.func @transform_0(%arg0: i32, %arg1: i32) -> (i32, i32, i32) {
    %c0_i32 = arith.constant 0 : i32
    %c0_i32_0 = arith.constant 0 : i32
    return %arg1, %arg0, %c0_i32 : i32, i32, i32
  }
  func.func @transform_1(%arg0: i32, %arg1: i32) -> (i32, i32) {
    %c0_i32 = arith.constant 0 : i32
    %c0_i32_0 = arith.constant 0 : i32
    %c0_i32_1 = arith.constant 0 : i32
    return %c0_i32, %c0_i32_0 : i32, i32
  }
  func.func @transform_2(%arg0: i32, %arg1: i32) -> (i32, i32) {
    %c0_i32 = arith.constant 0 : i32
    %c0_i32_0 = arith.constant 0 : i32
    %c0_i32_1 = arith.constant 0 : i32
    return %c0_i32, %c0_i32_0 : i32, i32
  }
  func.func @transform_3(%arg0: i32, %arg1: i32) -> (i32, i32) {
    %c0_i32 = arith.constant 0 : i32
    %c0_i32_0 = arith.constant 0 : i32
    %c0_i32_1 = arith.constant 0 : i32
    return %c0_i32, %c0_i32_0 : i32, i32
  }
  func.func @transform_4(%arg0: i32, %arg1: i32) -> (i32, i32) {
    %c0_i32 = arith.constant 0 : i32
    %c0_i32_0 = arith.constant 0 : i32
    %c0_i32_1 = arith.constant 0 : i32
    return %c0_i32, %c0_i32_0 : i32, i32
  }
  func.func @transform_5(%arg0: i32, %arg1: i32) -> (i32, i32) {
    %c0_i32 = arith.constant 0 : i32
    %c0_i32_0 = arith.constant 0 : i32
    %c0_i32_1 = arith.constant 0 : i32
    return %c0_i32, %c0_i32_0 : i32, i32
  }
  func.func @transform_6(%arg0: i32, %arg1: i32) -> (i32, i32) {
    %c0_i32 = arith.constant 0 : i32
    %c0_i32_0 = arith.constant 0 : i32
    %c0_i32_1 = arith.constant 0 : i32
    return %c0_i32, %c0_i32_0 : i32, i32
  }
  func.func @transform_7(%arg0: i32, %arg1: i32) -> (i32, i32) {
    %c0_i32 = arith.constant 0 : i32
    %c0_i32_0 = arith.constant 0 : i32
    %c0_i32_1 = arith.constant 0 : i32
    return %c0_i32, %c0_i32_0 : i32, i32
  }
  func.func @transform_8(%arg0: i32, %arg1: i32) -> (i32, i32) {
    %c0_i32 = arith.constant 0 : i32
    %c0_i32_0 = arith.constant 0 : i32
    %c0_i32_1 = arith.constant 0 : i32
    return %c0_i32, %c0_i32_0 : i32, i32
  }
  func.func @transform_9(%arg0: i32, %arg1: i32) -> (i32, i32, i32) {
    %c0_i32 = arith.constant 0 : i32
    %c0_i32_0 = arith.constant 0 : i32
    %c0_i32_1 = arith.constant 0 : i32
    return %c0_i32, %arg0, %c0_i32_0 : i32, i32, i32
  }
}

</mosaic_0001>

<llo_original>
// kernel: tpu_custom_call.1
$region0: #{tpu_custom_call.1}
  #allocation0 [shape = 'u32[]', space=smem, size = 0x4, offset = 0x4, fixed_abs, tag = 'smem constant byte address 0x4 - core index']
  #allocation1 [shape = 'u32[144,128]{1,0:T(1,128)}', space=vmem, size = 0x12000, scoped, tag = 'internal scratch']
  #allocation2 [shape = 'f32[32,128]{1,0:T(8,128)}', space=vmem, size = 0x4000, scoped, tag = 'scratch operand']
  #allocation3 [shape = 'f32[32,512]{1,0:T(8,128)}', space=vmem, size = 0x10000, scoped, tag = 'scratch operand']
  #allocation4 [shape = 'f32[8,128]{1,0:T(8,128)}', space=vmem, size = 0x1000, scoped, tag = 'scratch operand']
  #allocation5 [shape = 'f32[8,128]{1,0:T(8,128)}', space=vmem, size = 0x1000, scoped, tag = 'scratch operand']
  #allocation6 [shape = 'f32[8,1]{1,0:T(8,128)}', space=vmem, size = 0x1000, scoped, tag = 'scratch operand']
  #allocation7 [shape = 'f32[8,1]{1,0:T(8,128)}', space=vmem, size = 0x1000, scoped, tag = 'scratch operand']
  #allocation8 [shape = 'f32[8,128]{1,0:T(8,128)}', space=vmem, size = 0x1000, scoped, tag = 'scratch operand']
  %s0 = inlined_call_operand.hbm [shape: bf16[16,16,128], index: 0, kind: input, shape index: {}]
  %s1 = inlined_call_operand.hbm [shape: bf16[128,512], index: 1, kind: input, shape index: {}]
  %s2 = inlined_call_operand.hbm [shape: bf16[128,512], index: 2, kind: input, shape index: {}]
  %s3 = inlined_call_operand.vmem [shape: f32[1,512], index: 3, kind: input, shape index: {}]
  %s4 = inlined_call_operand.hbm [shape: bf16[128,128], index: 4, kind: input, shape index: {}]
  %s5 = inlined_call_operand.vmem [shape: f32[1,128], index: 5, kind: input, shape index: {}]
  %s6 = inlined_call_operand.vmem [shape: f32[1,128], index: 6, kind: input, shape index: {}]
  %s7 = inlined_call_operand.hbm [shape: bf16[128,128], index: 7, kind: input, shape index: {}]
  %s8 = inlined_call_operand.vmem [shape: f32[1,128], index: 8, kind: input, shape index: {}]
  %s9 = inlined_call_operand.hbm [shape: f32[1,16,128], index: 9, kind: output, shape index: {}]
  %s10 = sld [smem:[#allocation0]]
  $region97: #{tpu_custom_call.1} parent=0
    _
  %s12 = ssub.s32 1, %s10
  %s13 = scalar_select 0, %s12, %s10
  $region1: #{tpu_custom_call.1} parent=0
    #allocation9 [shape = 'u8[16384]{0}', space=vmem, size = 0x4000, scoped, tag = 'input window, operand 0']
    #allocation10 [shape = 's32[2]{0}', space=sflag, size = 0x8, scoped, tag = 'scoped memory for tpu_custom_call.1']
    #allocation11 [shape = 's32[2]{0}', space=sflag, size = 0x8, scoped, tag = 'scoped memory for tpu_custom_call.1']
    #allocation12 [shape = 'u8[131072]{0}', space=vmem, size = 0x20000, scoped, tag = 'input window, operand 1, single buffered']
    #allocation13 [shape = 's32[1]{0}', space=sflag, size = 0x4, scoped, tag = 'scoped memory for tpu_custom_call.1']
    #allocation14 [shape = 'u8[131072]{0}', space=vmem, size = 0x20000, scoped, tag = 'input window, operand 2, single buffered']
    #allocation15 [shape = 'u8[32768]{0}', space=vmem, size = 0x8000, scoped, tag = 'input window, operand 4, single buffered']
    #allocation16 [shape = 's32[1]{0}', space=sflag, size = 0x4, scoped, tag = 'scoped memory for tpu_custom_call.1']
    #allocation17 [shape = 'u8[32768]{0}', space=vmem, size = 0x8000, scoped, tag = 'input window, operand 7, single buffered']
    #allocation18 [shape = 'u8[8192]{0}', space=vmem, size = 0x2000, scoped, tag = 'output window, operand 0']
    %14 = vsyncpa [#allocation10], 0
    %s15 = scalar_lea.sflag [#allocation10], 1
    %16 = vsyncpa %s15, 0
    %17 = vsyncpa [#allocation13], 0
    %18 = vsyncpa [#allocation16], 0
    %19 = vsyncpa [#allocation11], 0
    %s20 = scalar_lea.sflag [#allocation11], 1
    %21 = vsyncpa %s20, 0
    loop: start=0, step=1, limit=10
    $region2: #{tpu_custom_call.1} parent=1 // loop_pre_header
      _
    $region3: #{tpu_custom_call.1} parent=1 // loop_header
      %s23 = sphi 0, %s27
      %p24 = scmp.ge.s32.totalorder %s23, 10
      %s30 = sphi 0, %s42
      %s31 = sphi 0, %s38
      %s32 = sphi 0, %s30
      %s33 = sphi 0, %s31
      %s34 = sphi 0, %s32
      %s35 = sphi 0, %s33
      %s47 = sphi 0, %s49
      %s50 = sphi 0, %s47
      %s51 = sphi 0, %s50
      %s67 = sphi 0, %s51
      %s71 = sphi 0, %s71
      %s73 = sphi 0, %s71
      %s74 = sphi 0, %s73
      %s88 = sphi 0, %s74
      %s92 = sphi 0, %s92
      %s94 = sphi 0, %s92
      %s95 = sphi 0, %s94
      %s109 = sphi 0, %s95
      %s113 = sphi 0, %s113
      %s115 = sphi 0, %s113
      %s116 = sphi 0, %s115
      %s130 = sphi 0, %s116
      %s134 = sphi 0, %s134
      %s136 = sphi 0, %s134
      %s137 = sphi 0, %s136
      %s151 = sphi 0, %s137
      %s155 = sphi 0, %s155
      %s157 = sphi 0, %s155
      %s158 = sphi 0, %s157
      %s172 = sphi 0, %s158
      %s176 = sphi 0, %s176
      %s178 = sphi 0, %s176
      %s179 = sphi 0, %s178
      %s193 = sphi 0, %s179
      %s197 = sphi 0, %s197
      %s199 = sphi 0, %s197
      %s200 = sphi 0, %s199
      %s214 = sphi 0, %s200
      %s218 = sphi 0, %s218
      %s220 = sphi 0, %s218
      %s221 = sphi 0, %s220
      %s235 = sphi 0, %s221
      %s241 = sphi 0, %s243
      %s244 = sphi 0, %s241
      %s245 = sphi 0, %s244
      %s261 = sphi 0, %s245
    $region4: #{tpu_custom_call.1} parent=1 // loop_header_branch
      %26 = sbr.rel (%p24) target = $region8
    $region5: #{tpu_custom_call.1} parent=1 // loop_body
      %s28 = ssub.s32 %s23, 1
      %s29 = ssub.s32 %s23, 2
      %s36 = sadd.s32 1, %s31
      %p37 = scmp.ge.s32.totalorder %s36, 4
      %s38 = scalar_select %p37, 0, %s36
      %s39 = sadd.s32 1, %s30
      %s40 = scalar_select %p37, %s39, %s30
      %p41 = scmp.ge.s32.totalorder %s40, 2
      %s42 = scalar_select %p41, 0, %s40
      %s43 = ssub.s32 %s31, %s38
      %s44 = ssub.s32 %s30, %s42
      %s45 = sor.u32 %s43, %s44
      %p46 = scmp.eq.s32.totalorder %s45, 0
      %s48 = sadd.s32 %s47, 1
      %s49 = scalar_select %p46, %s47, %s48
      %p52 = pneg %p46
      %p53 = scmp.eq.s32.totalorder %s23, 7
      %p54 = por %p52, %p53
      %p55 = scmp.ne.s32.totalorder %s47, %s50
      %p56 = scmp.eq.s32.totalorder %s23, 0
      %p57 = por %p55, %p56
      %p58 = scmp.ne.s32.totalorder %s47, %s50
      %p59 = scmp.eq.s32.totalorder %s28, 7
      %p60 = por %p58, %p59
      %p61 = scmp.ne.s32.totalorder %s50, %s51
      %p62 = scmp.eq.s32.totalorder %s28, 0
      %p63 = por %p61, %p62
      %p64 = scmp.ne.s32.totalorder %s50, %s51
      %p65 = scmp.eq.s32.totalorder %s29, 7
      %p66 = por %p64, %p65
      %p68 = scmp.ne.s32.totalorder %s51, %s67
      %p69 = scmp.eq.s32.totalorder %s29, 0
      %p70 = por %p68, %p69
      %s72 = sadd.s32 %s71, 1
      %p75 = scmp.eq.s32.totalorder %s23, 7
      %p76 = scmp.ne.s32.totalorder %s71, %s73
      %p77 = scmp.eq.s32.totalorder %s23, 0
      %p78 = por %p76, %p77
      %p79 = scmp.ne.s32.totalorder %s71, %s73
      %p80 = scmp.eq.s32.totalorder %s28, 7
      %p81 = por %p79, %p80
      %p82 = scmp.ne.s32.totalorder %s73, %s74
      %p83 = scmp.eq.s32.totalorder %s28, 0
      %p84 = por %p82, %p83
      %p85 = scmp.ne.s32.totalorder %s73, %s74
      %p86 = scmp.eq.s32.totalorder %s29, 7
      %p87 = por %p85, %p86
      %p89 = scmp.ne.s32.totalorder %s74, %s88
      %p90 = scmp.eq.s32.totalorder %s29, 0
      %p91 = por %p89, %p90
      %s93 = sadd.s32 %s92, 1
      %p96 = scmp.eq.s32.totalorder %s23, 7
      %p97 = scmp.ne.s32.totalorder %s92, %s94
      %p98 = scmp.eq.s32.totalorder %s23, 0
      %p99 = por %p97, %p98
      %p100 = scmp.ne.s32.totalorder %s92, %s94
      %p101 = scmp.eq.s32.totalorder %s28, 7
      %p102 = por %p100, %p101
      %p103 = scmp.ne.s32.totalorder %s94, %s95
      %p104 = scmp.eq.s32.totalorder %s28, 0
      %p105 = por %p103, %p104
      %p106 = scmp.ne.s32.totalorder %s94, %s95
      %p107 = scmp.eq.s32.totalorder %s29, 7
      %p108 = por %p106, %p107
      %p110 = scmp.ne.s32.totalorder %s95, %s109
      %p111 = scmp.eq.s32.totalorder %s29, 0
      %p112 = por %p110, %p111
      %s114 = sadd.s32 %s113, 1
      %p117 = scmp.eq.s32.totalorder %s23, 7
      %p118 = scmp.ne.s32.totalorder %s113, %s115
      %p119 = scmp.eq.s32.totalorder %s23, 0
      %p120 = por %p118, %p119
      %p121 = scmp.ne.s32.totalorder %s113, %s115
      %p122 = scmp.eq.s32.totalorder %s28, 7
      %p123 = por %p121, %p122
      %p124 = scmp.ne.s32.totalorder %s115, %s116
      %p125 = scmp.eq.s32.totalorder %s28, 0
      %p126 = por %p124, %p125
      %p127 = scmp.ne.s32.totalorder %s115, %s116
      %p128 = scmp.eq.s32.totalorder %s29, 7
      %p129 = por %p127, %p128
      %p131 = scmp.ne.s32.totalorder %s116, %s130
      %p132 = scmp.eq.s32.totalorder %s29, 0
      %p133 = por %p131, %p132
      %s135 = sadd.s32 %s134, 1
      %p138 = scmp.eq.s32.totalorder %s23, 7
      %p139 = scmp.ne.s32.totalorder %s134, %s136
      %p140 = scmp.eq.s32.totalorder %s23, 0
      %p141 = por %p139, %p140
      %p142 = scmp.ne.s32.totalorder %s134, %s136
      %p143 = scmp.eq.s32.totalorder %s28, 7
      %p144 = por %p142, %p143
      %p145 = scmp.ne.s32.totalorder %s136, %s137
      %p146 = scmp.eq.s32.totalorder %s28, 0
      %p147 = por %p145, %p146
      %p148 = scmp.ne.s32.totalorder %s136, %s137
      %p149 = scmp.eq.s32.totalorder %s29, 7
      %p150 = por %p148, %p149
      %p152 = scmp.ne.s32.totalorder %s137, %s151
      %p153 = scmp.eq.s32.totalorder %s29, 0
      %p154 = por %p152, %p153
      %s156 = sadd.s32 %s155, 1
      %p159 = scmp.eq.s32.totalorder %s23, 7
      %p160 = scmp.ne.s32.totalorder %s155, %s157
      %p161 = scmp.eq.s32.totalorder %s23, 0
      %p162 = por %p160, %p161
      %p163 = scmp.ne.s32.totalorder %s155, %s157
      %p164 = scmp.eq.s32.totalorder %s28, 7
      %p165 = por %p163, %p164
      %p166 = scmp.ne.s32.totalorder %s157, %s158
      %p167 = scmp.eq.s32.totalorder %s28, 0
      %p168 = por %p166, %p167
      %p169 = scmp.ne.s32.totalorder %s157, %s158
      %p170 = scmp.eq.s32.totalorder %s29, 7
      %p171 = por %p169, %p170
      %p173 = scmp.ne.s32.totalorder %s158, %s172
      %p174 = scmp.eq.s32.totalorder %s29, 0
      %p175 = por %p173, %p174
      %s177 = sadd.s32 %s176, 1
      %p180 = scmp.eq.s32.totalorder %s23, 7
      %p181 = scmp.ne.s32.totalorder %s176, %s178
      %p182 = scmp.eq.s32.totalorder %s23, 0
      %p183 = por %p181, %p182
      %p184 = scmp.ne.s32.totalorder %s176, %s178
      %p185 = scmp.eq.s32.totalorder %s28, 7
      %p186 = por %p184, %p185
      %p187 = scmp.ne.s32.totalorder %s178, %s179
      %p188 = scmp.eq.s32.totalorder %s28, 0
      %p189 = por %p187, %p188
      %p190 = scmp.ne.s32.totalorder %s178, %s179
      %p191 = scmp.eq.s32.totalorder %s29, 7
      %p192 = por %p190, %p191
      %p194 = scmp.ne.s32.totalorder %s179, %s193
      %p195 = scmp.eq.s32.totalorder %s29, 0
      %p196 = por %p194, %p195
      %s198 = sadd.s32 %s197, 1
      %p201 = scmp.eq.s32.totalorder %s23, 7
      %p202 = scmp.ne.s32.totalorder %s197, %s199
      %p203 = scmp.eq.s32.totalorder %s23, 0
      %p204 = por %p202, %p203
      %p205 = scmp.ne.s32.totalorder %s197, %s199
      %p206 = scmp.eq.s32.totalorder %s28, 7
      %p207 = por %p205, %p206
      %p208 = scmp.ne.s32.totalorder %s199, %s200
      %p209 = scmp.eq.s32.totalorder %s28, 0
      %p210 = por %p208, %p209
      %p211 = scmp.ne.s32.totalorder %s199, %s200
      %p212 = scmp.eq.s32.totalorder %s29, 7
      %p213 = por %p211, %p212
      %p215 = scmp.ne.s32.totalorder %s200, %s214
      %p216 = scmp.eq.s32.totalorder %s29, 0
      %p217 = por %p215, %p216
      %s219 = sadd.s32 %s218, 1
      %p222 = scmp.eq.s32.totalorder %s23, 7
      %p223 = scmp.ne.s32.totalorder %s218, %s220
      %p224 = scmp.eq.s32.totalorder %s23, 0
      %p225 = por %p223, %p224
      %p226 = scmp.ne.s32.totalorder %s218, %s220
      %p227 = scmp.eq.s32.totalorder %s28, 7
      %p228 = por %p226, %p227
      %p229 = scmp.ne.s32.totalorder %s220, %s221
      %p230 = scmp.eq.s32.totalorder %s28, 0
      %p231 = por %p229, %p230
      %p232 = scmp.ne.s32.totalorder %s220, %s221
      %p233 = scmp.eq.s32.totalorder %s29, 7
      %p234 = por %p232, %p233
      %p236 = scmp.ne.s32.totalorder %s221, %s235
      %p237 = scmp.eq.s32.totalorder %s29, 0
      %p238 = por %p236, %p237
      %s239 = ssub.s32 %s30, %s42
      %p240 = scmp.eq.s32.totalorder %s239, 0
      %s242 = sadd.s32 %s241, 1
      %s243 = scalar_select %p240, %s241, %s242
      %p246 = pneg %p240
      %p247 = scmp.eq.s32.totalorder %s23, 7
      %p248 = por %p246, %p247
      %p249 = scmp.ne.s32.totalorder %s241, %s244
      %p250 = scmp.eq.s32.totalorder %s23, 0
      %p251 = por %p249, %p250
      %p252 = scmp.ne.s32.totalorder %s241, %s244
      %p253 = scmp.eq.s32.totalorder %s28, 7
      %p254 = por %p252, %p253
      %p255 = scmp.ne.s32.totalorder %s244, %s245
      %p256 = scmp.eq.s32.totalorder %s28, 0
      %p257 = por %p255, %p256
      %p258 = scmp.ne.s32.totalorder %s244, %s245
      %p259 = scmp.eq.s32.totalorder %s29, 7
      %p260 = por %p258, %p259
      %p262 = scmp.ne.s32.totalorder %s245, %s261
      %p263 = scmp.eq.s32.totalorder %s29, 0
      %p264 = por %p262, %p263
      %p265 = scmp.le.s32.totalorder 1, %s23
      %p266 = scmp.lt.s32.totalorder %s23, 9
      %p267 = pnand %p265, %p266
      %p268 = pneg %p267
      // Predicated region
      $region9: #{tpu_custom_call.1} parent=5 // pred_check
        _
      $region10: #{tpu_custom_call.1} parent=5 // pred_check_branch
        %270 = sbr.rel (%p267) target = $region12
      $region11: #{tpu_custom_call.1} parent=5 // pred_region
        %s271 = ssub.s32 %s23, 1
        // Predicated region
        $region13: #{tpu_custom_call.1} parent=11 // pred_check
          %p272 = pneg %p84
        $region14: #{tpu_custom_call.1} parent=11 // pred_check_branch
          %274 = sbr.rel (%p272) target = $region16
        $region15: #{tpu_custom_call.1} parent=11 // pred_region
          %s276 = ssub.s32 4096, 4096
          %277 = vsyncadd [#allocation13], %s276
          %s278 = sshll.u32 [#allocation12], 4
          %s279 = int_to_ptr.vmem [resolvable:$true] %s278
          %284 = dma.hbm_to_vmem [thread:$0]  %s1, 4096, %s279, [#allocation13], 256, 256, 16
        $region16: #{tpu_custom_call.1} parent=11 // pred_fallthru
          _
        // Predicated region
        $region17: #{tpu_custom_call.1} parent=11 // pred_check
          %p285 = pneg %p105
        $region18: #{tpu_custom_call.1} parent=11 // pred_check_branch
          %287 = sbr.rel (%p285) target = $region20
        $region19: #{tpu_custom_call.1} parent=11 // pred_region
          %s289 = ssub.s32 4096, 4096
          %290 = vsyncadd [#allocation13], %s289
          %s291 = sshll.u32 [#allocation14], 4
          %s292 = int_to_ptr.vmem [resolvable:$true] %s291
          %297 = dma.hbm_to_vmem [thread:$0]  %s2, 4096, %s292, [#allocation13], 256, 256, 16
        $region20: #{tpu_custom_call.1} parent=11 // pred_fallthru
          _
        // Predicated region
        $region21: #{tpu_custom_call.1} parent=11 // pred_check
          %p298 = pneg %p126
        $region22: #{tpu_custom_call.1} parent=11 // pred_check_branch
          %300 = sbr.rel (%p298) target = $region24
        $region23: #{tpu_custom_call.1} parent=11 // pred_region
          _
        $region24: #{tpu_custom_call.1} parent=11 // pred_fallthru
          _
        // Predicated region
        $region25: #{tpu_custom_call.1} parent=11 // pred_check
          %p301 = pneg %p147
        $region26: #{tpu_custom_call.1} parent=11 // pred_check_branch
          %303 = sbr.rel (%p301) target = $region28
        $region27: #{tpu_custom_call.1} parent=11 // pred_region
          %s305 = ssub.s32 1024, 1024
          %306 = vsyncadd [#allocation16], %s305
          %s307 = sshll.u32 [#allocation15], 4
          %s308 = int_to_ptr.vmem [resolvable:$true] %s307
          %313 = dma.hbm_to_vmem [thread:$0]  %s4, 1024, %s308, [#allocation16], 64, 64, 4
        $region28: #{tpu_custom_call.1} parent=11 // pred_fallthru
          _
        // Predicated region
        $region29: #{tpu_custom_call.1} parent=11 // pred_check
          %p314 = pneg %p168
        $region30: #{tpu_custom_call.1} parent=11 // pred_check_branch
          %316 = sbr.rel (%p314) target = $region32
        $region31: #{tpu_custom_call.1} parent=11 // pred_region
          _
        $region32: #{tpu_custom_call.1} parent=11 // pred_fallthru
          _
        // Predicated region
        $region33: #{tpu_custom_call.1} parent=11 // pred_check
          %p317 = pneg %p189
        $region34: #{tpu_custom_call.1} parent=11 // pred_check_branch
          %319 = sbr.rel (%p317) target = $region36
        $region35: #{tpu_custom_call.1} parent=11 // pred_region
          _
        $region36: #{tpu_custom_call.1} parent=11 // pred_fallthru
          _
        // Predicated region
        $region37: #{tpu_custom_call.1} parent=11 // pred_check
          %p320 = pneg %p210
        $region38: #{tpu_custom_call.1} parent=11 // pred_check_branch
          %322 = sbr.rel (%p320) target = $region40
        $region39: #{tpu_custom_call.1} parent=11 // pred_region
          %s324 = ssub.s32 1024, 1024
          %325 = vsyncadd [#allocation16], %s324
          %s326 = sshll.u32 [#allocation17], 4
          %s327 = int_to_ptr.vmem [resolvable:$true] %s326
          %332 = dma.hbm_to_vmem [thread:$0]  %s7, 1024, %s327, [#allocation16], 64, 64, 4
        $region40: #{tpu_custom_call.1} parent=11 // pred_fallthru
          _
        // Predicated region
        $region41: #{tpu_custom_call.1} parent=11 // pred_check
          %p333 = pneg %p231
        $region42: #{tpu_custom_call.1} parent=11 // pred_check_branch
          %335 = sbr.rel (%p333) target = $region44
        $region43: #{tpu_custom_call.1} parent=11 // pred_region
          _
        $region44: #{tpu_custom_call.1} parent=11 // pred_fallthru
          _
      $region12: #{tpu_custom_call.1} parent=5 // pred_fallthru
        _
      %p336 = scmp.lt.s32.totalorder %s23, 8
      // Predicated region
      $region45: #{tpu_custom_call.1} parent=5 // pred_check
        %p337 = pneg %p336
      $region46: #{tpu_custom_call.1} parent=5 // pred_check_branch
        %339 = sbr.rel (%p337) target = $region48
      $region47: #{tpu_custom_call.1} parent=5 // pred_region
        // Predicated region
        $region49: #{tpu_custom_call.1} parent=47 // pred_check
          %p340 = pneg %p57
        $region50: #{tpu_custom_call.1} parent=47 // pred_check_branch
          %342 = sbr.rel (%p340) target = $region52
        $region51: #{tpu_custom_call.1} parent=47 // pred_region
          %s343 = sand.u32 %s47, 1
          %s344 = scalar_lea.sflag [#allocation10], %s343
          %s345 = sand.u32 %s47, 1
          %s346 = smul.addr %s345, 16
          %s347 = scalar_lea.vmem [#allocation9], %s346
          %s348 = smul.u32 4, %s31
          %s350 = ssub.s32 256, 256
          %351 = vsyncadd %s344, %s350
          %s352 = smul.addr %s348, 2
          %s353 = sadd.s32 %s30, %s352
          %s354 = smul.addr %s353, 64
          %s355 = scalar_lea.hbm %s0, %s354
          %s356 = sshll.u32 %s347, 4
          %s357 = int_to_ptr.vmem [resolvable:$true] %s356
          %362 = dma.hbm_to_vmem [thread:$0]  %s355, 256, %s357, %s344, 128, 64, 4
        $region52: #{tpu_custom_call.1} parent=47 // pred_fallthru
          _
      $region48: #{tpu_custom_call.1} parent=5 // pred_fallthru
        _
      %p363 = scmp.le.s32.totalorder 1, %s23
      %p364 = scmp.lt.s32.totalorder %s23, 9
      %p365 = pnand %p363, %p364
      %p366 = pneg %p365
      // Predicated region
      $region53: #{tpu_custom_call.1} parent=5 // pred_check
        _
      $region54: #{tpu_custom_call.1} parent=5 // pred_check_branch
        %368 = sbr.rel (%p365) target = $region56
      $region55: #{tpu_custom_call.1} parent=5 // pred_region
        %s369 = ssub.s32 %s23, 1
        %s370 = sand.u32 %s50, 1
        %s371 = scalar_lea.sflag [#allocation10], %s370
        %s372 = sand.u32 %s50, 1
        %s373 = smul.addr %s372, 16
        %s374 = scalar_lea.vmem [#allocation9], %s373
        // Predicated region
        $region57: #{tpu_custom_call.1} parent=55 // pred_check
          %p375 = pneg %p63
        $region58: #{tpu_custom_call.1} parent=55 // pred_check_branch
          %377 = sbr.rel (%p375) target = $region60
        $region59: #{tpu_custom_call.1} parent=55 // pred_region
          %378 = dma.done %s371, 256
        $region60: #{tpu_custom_call.1} parent=55 // pred_fallthru
          _
        // Predicated region
        $region61: #{tpu_custom_call.1} parent=55 // pred_check
          %p379 = pneg %p84
        $region62: #{tpu_custom_call.1} parent=55 // pred_check_branch
          %381 = sbr.rel (%p379) target = $region64
        $region63: #{tpu_custom_call.1} parent=55 // pred_region
          %382 = dma.done [#allocation13], 4096
        $region64: #{tpu_custom_call.1} parent=55 // pred_fallthru
          _
        // Predicated region
        $region65: #{tpu_custom_call.1} parent=55 // pred_check
          %p383 = pneg %p105
        $region66: #{tpu_custom_call.1} parent=55 // pred_check_branch
          %385 = sbr.rel (%p383) target = $region68
        $region67: #{tpu_custom_call.1} parent=55 // pred_region
          %386 = dma.done [#allocation13], 4096
        $region68: #{tpu_custom_call.1} parent=55 // pred_fallthru
          _
        // Predicated region
        $region69: #{tpu_custom_call.1} parent=55 // pred_check
          %p387 = pneg %p147
        $region70: #{tpu_custom_call.1} parent=55 // pred_check_branch
          %389 = sbr.rel (%p387) target = $region72
        $region71: #{tpu_custom_call.1} parent=55 // pred_region
          %390 = dma.done [#allocation16], 1024
        $region72: #{tpu_custom_call.1} parent=55 // pred_fallthru
          _
        // Predicated region
        $region73: #{tpu_custom_call.1} parent=55 // pred_check
          %p391 = pneg %p210
        $region74: #{tpu_custom_call.1} parent=55 // pred_check_branch
          %393 = sbr.rel (%p391) target = $region76
        $region75: #{tpu_custom_call.1} parent=55 // pred_region
          %394 = dma.done [#allocation16], 1024
        $region76: #{tpu_custom_call.1} parent=55 // pred_fallthru
          _
        %s395 = sand.u32 %s50, 1
        %s396 = scalar_lea.sflag [#allocation10], %s395
        %s397 = sand.u32 %s50, 1
        %s398 = smul.addr %s397, 16
        %s399 = scalar_lea.vmem [#allocation9], %s398
        %p400 = pneg %p63
        %p401 = pneg %p60
        %p402 = pneg %p84
        %p403 = pneg %p81
        %p404 = pneg %p105
        %p405 = pneg %p102
        %p406 = pneg %p126
        %p407 = pneg %p123
        %p408 = pneg %p147
        %p409 = pneg %p144
        %p410 = pneg %p168
        %p411 = pneg %p165
        %p412 = pneg %p189
        %p413 = pneg %p186
        %p414 = pneg %p210
        %p415 = pneg %p207
        %p416 = pneg %p231
        %p417 = pneg %p228
        %p418 = pneg %p257
        %p419 = pneg %p254
        %s420 = sand.u32 %s244, 1
        %s421 = scalar_lea.sflag [#allocation11], %s420
        %s422 = sand.u32 %s244, 1
        %s423 = smul.addr %s422, 8
        %s424 = scalar_lea.vmem [#allocation18], %s423
        %s425 = smul.u32 4, %s33
        %p427 = scmp.eq.s32.totalorder %s33, 0
        // Predicated region
        $region77: #{tpu_custom_call.1} parent=55 // pred_check
          %p428 = pneg %p427
        $region78: #{tpu_custom_call.1} parent=55 // pred_check_branch
          %430 = sbr.rel (%p428) target = $region80
        $region79: #{tpu_custom_call.1} parent=55 // pred_region
          %431 = vst [vmem:[#allocation4] sm:$0xff] 0.0
          %432 = vst [vmem:[#allocation5] sm:$0xff] 0.0
          %vm433 = vcmask 7168
          %434 = vst.msk [vmem:[#allocation6] sm:$0xff] %vm433, -1e+30
          %435 = vst.msk [vmem:[#allocation7] sm:$0xff] %vm433, 0.0
          %436 = vst [vmem:[#allocation8] sm:$0xff] 0.0
        $region80: #{tpu_custom_call.1} parent=55 // pred_fallthru
          _
        %v437 = vld [vmem:[#allocation14] sm:$0xff]
        %v438 = vld [vmem:[#allocation14 + $0x8] sm:$0xff]
        %v439 = vld [vmem:[#allocation14 + $0x10] sm:$0xff]
        %v440 = vld [vmem:[#allocation14 + $0x18] sm:$0xff]
        %v441 = vld [vmem:[#allocation14 + $0x20] sm:$0xff]
        %v442 = vld [vmem:[#allocation14 + $0x28] sm:$0xff]
        %v443 = vld [vmem:[#allocation14 + $0x30] sm:$0xff]
        %v444 = vld [vmem:[#allocation14 + $0x38] sm:$0xff]
        %v445 = vld [vmem:[#allocation14 + $0x40] sm:$0xff]
        %v446 = vld [vmem:[#allocation14 + $0x48] sm:$0xff]
        %v447 = vld [vmem:[#allocation14 + $0x50] sm:$0xff]
        %v448 = vld [vmem:[#allocation14 + $0x58] sm:$0xff]
        %v449 = vld [vmem:[#allocation14 + $0x60] sm:$0xff]
        %v450 = vld [vmem:[#allocation14 + $0x68] sm:$0xff]
        %v451 = vld [vmem:[#allocation14 + $0x70] sm:$0xff]
        %v452 = vld [vmem:[#allocation14 + $0x78] sm:$0xff]
        %v453 = vld [vmem:[#allocation14 + $0x80] sm:$0xff]
        %v454 = vld [vmem:[#allocation14 + $0x88] sm:$0xff]
        %v455 = vld [vmem:[#allocation14 + $0x90] sm:$0xff]
        %v456 = vld [vmem:[#allocation14 + $0x98] sm:$0xff]
        %v457 = vld [vmem:[#allocation14 + $0xa0] sm:$0xff]
        %v458 = vld [vmem:[#allocation14 + $0xa8] sm:$0xff]
        %v459 = vld [vmem:[#allocation14 + $0xb0] sm:$0xff]
        %v460 = vld [vmem:[#allocation14 + $0xb8] sm:$0xff]
        %v461 = vld [vmem:[#allocation14 + $0xc0] sm:$0xff]
        %v462 = vld [vmem:[#allocation14 + $0xc8] sm:$0xff]
        %v463 = vld [vmem:[#allocation14 + $0xd0] sm:$0xff]
        %v464 = vld [vmem:[#allocation14 + $0xd8] sm:$0xff]
        %v465 = vld [vmem:[#allocation14 + $0xe0] sm:$0xff]
        %v466 = vld [vmem:[#allocation14 + $0xe8] sm:$0xff]
        %v467 = vld [vmem:[#allocation14 + $0xf0] sm:$0xff]
        %v468 = vld [vmem:[#allocation14 + $0xf8] sm:$0xff]
        %v469 = vld [vmem:[%s374] sm:$0xf]
        %v470 = vld [vmem:[%s374 + $0x4] sm:$0xf]
        %v471 = vld [vmem:[%s374 + $0x8] sm:$0xf]
        %v472 = vld [vmem:[%s374 + $0xc] sm:$0xf]
        %v473 = vld [vmem:[#allocation12] sm:$0xff]
        %v474 = vld [vmem:[#allocation12 + $0x8] sm:$0xff]
        %v475 = vld [vmem:[#allocation12 + $0x10] sm:$0xff]
        %v476 = vld [vmem:[#allocation12 + $0x18] sm:$0xff]
        %v477 = vld [vmem:[#allocation12 + $0x20] sm:$0xff]
        %v478 = vld [vmem:[#allocation12 + $0x28] sm:$0xff]
        %v479 = vld [vmem:[#allocation12 + $0x30] sm:$0xff]
        %v480 = vld [vmem:[#allocation12 + $0x38] sm:$0xff]
        %v481 = vld [vmem:[#allocation12 + $0x40] sm:$0xff]
        %v482 = vld [vmem:[#allocation12 + $0x48] sm:$0xff]
        %v483 = vld [vmem:[#allocation12 + $0x50] sm:$0xff]
        %v484 = vld [vmem:[#allocation12 + $0x58] sm:$0xff]
        %v485 = vld [vmem:[#allocation12 + $0x60] sm:$0xff]
        %v486 = vld [vmem:[#allocation12 + $0x68] sm:$0xff]
        %v487 = vld [vmem:[#allocation12 + $0x70] sm:$0xff]
        %v488 = vld [vmem:[#allocation12 + $0x78] sm:$0xff]
        %v489 = vld [vmem:[#allocation12 + $0x80] sm:$0xff]
        %v490 = vld [vmem:[#allocation12 + $0x88] sm:$0xff]
        %v491 = vld [vmem:[#allocation12 + $0x90] sm:$0xff]
        %v492 = vld [vmem:[#allocation12 + $0x98] sm:$0xff]
        %v493 = vld [vmem:[#allocation12 + $0xa0] sm:$0xff]
        %v494 = vld [vmem:[#allocation12 + $0xa8] sm:$0xff]
        %v495 = vld [vmem:[#allocation12 + $0xb0] sm:$0xff]
        %v496 = vld [vmem:[#allocation12 + $0xb8] sm:$0xff]
        %v497 = vld [vmem:[#allocation12 + $0xc0] sm:$0xff]
        %v498 = vld [vmem:[#allocation12 + $0xc8] sm:$0xff]
        %v499 = vld [vmem:[#allocation12 + $0xd0] sm:$0xff]
        %v500 = vld [vmem:[#allocation12 + $0xd8] sm:$0xff]
        %v501 = vld [vmem:[#allocation12 + $0xe0] sm:$0xff]
        %v502 = vld [vmem:[#allocation12 + $0xe8] sm:$0xff]
        %v503 = vld [vmem:[#allocation12 + $0xf0] sm:$0xff]
        %v504 = vld [vmem:[#allocation12 + $0xf8] sm:$0xff]
        %v505 = vld [vmem:[%s3] sm:$0xf]
        %v507 = vlaneseq
        %v508 = vshrl.u32 %v507, 7
        %v509 = vsub.s32 0, %v508
        %v510 = vrot.slane %v505, %v509
        %v511 = vlaneseq
        %v512 = vshrl.u32 %v511, 7
        %v513 = vsub.s32 1, %v512
        %v514 = vrot.slane %v505, %v513
        %v515 = vlaneseq
        %v516 = vshrl.u32 %v515, 7
        %v517 = vsub.s32 2, %v516
        %v518 = vrot.slane %v505, %v517
        %v519 = vlaneseq
        %v520 = vshrl.u32 %v519, 7
        %v521 = vsub.s32 3, %v520
        %v522 = vrot.slane %v505, %v521
        %v531 = vunpack.c.l.b16 %v469
        %v532 = vunpack.c.l.b16 %v470
        %v533 = vunpack.c.l.b16 %v471
        %v534 = vunpack.c.l.b16 %v472
        %v535 = vpack.c.b16 %v532, %v531
        %v536 = vpack.c.b16 %v534, %v533
        %v571 = vunpack.c.l.b16 %v473
        %v572 = vunpack.c.h.b16 %v473
        %v573 = vunpack.c.l.b16 %v474
        %v574 = vunpack.c.h.b16 %v474
        %v575 = vunpack.c.l.b16 %v475
        %v576 = vunpack.c.h.b16 %v475
        %v577 = vunpack.c.l.b16 %v476
        %v578 = vunpack.c.h.b16 %v476
        %v579 = vunpack.c.l.b16 %v477
        %v580 = vunpack.c.h.b16 %v477
        %v581 = vunpack.c.l.b16 %v478
        %v582 = vunpack.c.h.b16 %v478
        %v583 = vunpack.c.l.b16 %v479
        %v584 = vunpack.c.h.b16 %v479
        %v585 = vunpack.c.l.b16 %v480
        %v586 = vunpack.c.h.b16 %v480
        %v587 = vunpack.c.l.b16 %v481
        %v588 = vunpack.c.h.b16 %v481
        %v589 = vunpack.c.l.b16 %v482
        %v590 = vunpack.c.h.b16 %v482
        %v591 = vunpack.c.l.b16 %v483
        %v592 = vunpack.c.h.b16 %v483
        %v593 = vunpack.c.l.b16 %v484
        %v594 = vunpack.c.h.b16 %v484
        %v595 = vunpack.c.l.b16 %v485
        %v596 = vunpack.c.h.b16 %v485
        %v597 = vunpack.c.l.b16 %v486
        %v598 = vunpack.c.h.b16 %v486
        %v599 = vunpack.c.l.b16 %v487
        %v600 = vunpack.c.h.b16 %v487
        %v601 = vunpack.c.l.b16 %v488
        %v602 = vunpack.c.h.b16 %v488
        %v603 = vunpack.c.l.b16 %v489
        %v604 = vunpack.c.h.b16 %v489
        %v605 = vunpack.c.l.b16 %v490
        %v606 = vunpack.c.h.b16 %v490
        %v607 = vunpack.c.l.b16 %v491
        %v608 = vunpack.c.h.b16 %v491
        %v609 = vunpack.c.l.b16 %v492
        %v610 = vunpack.c.h.b16 %v492
        %v611 = vunpack.c.l.b16 %v493
        %v612 = vunpack.c.h.b16 %v493
        %v613 = vunpack.c.l.b16 %v494
        %v614 = vunpack.c.h.b16 %v494
        %v615 = vunpack.c.l.b16 %v495
        %v616 = vunpack.c.h.b16 %v495
        %v617 = vunpack.c.l.b16 %v496
        %v618 = vunpack.c.h.b16 %v496
        %v619 = vunpack.c.l.b16 %v497
        %v620 = vunpack.c.h.b16 %v497
        %v621 = vunpack.c.l.b16 %v498
        %v622 = vunpack.c.h.b16 %v498
        %v623 = vunpack.c.l.b16 %v499
        %v624 = vunpack.c.h.b16 %v499
        %v625 = vunpack.c.l.b16 %v500
        %v626 = vunpack.c.h.b16 %v500
        %v627 = vunpack.c.l.b16 %v501
        %v628 = vunpack.c.h.b16 %v501
        %v629 = vunpack.c.l.b16 %v502
        %v630 = vunpack.c.h.b16 %v502
        %v631 = vunpack.c.l.b16 %v503
        %v632 = vunpack.c.h.b16 %v503
        %v633 = vunpack.c.l.b16 %v504
        %v634 = vunpack.c.h.b16 %v504
        %v635 = vpack.c.b16 %v575, %v571
        %v636 = vpack.c.b16 %v576, %v572
        %v637 = vpack.c.b16 %v577, %v573
        %v638 = vpack.c.b16 %v578, %v574
        %v639 = vpack.c.b16 %v583, %v579
        %v640 = vpack.c.b16 %v584, %v580
        %v641 = vpack.c.b16 %v585, %v581
        %v642 = vpack.c.b16 %v586, %v582
        %v643 = vpack.c.b16 %v591, %v587
        %v644 = vpack.c.b16 %v592, %v588
        %v645 = vpack.c.b16 %v593, %v589
        %v646 = vpack.c.b16 %v594, %v590
        %v647 = vpack.c.b16 %v599, %v595
        %v648 = vpack.c.b16 %v600, %v596
        %v649 = vpack.c.b16 %v601, %v597
        %v650 = vpack.c.b16 %v602, %v598
        %v651 = vpack.c.b16 %v607, %v603
        %v652 = vpack.c.b16 %v608, %v604
        %v653 = vpack.c.b16 %v609, %v605
        %v654 = vpack.c.b16 %v610, %v606
        %v655 = vpack.c.b16 %v615, %v611
        %v656 = vpack.c.b16 %v616, %v612
        %v657 = vpack.c.b16 %v617, %v613
        %v658 = vpack.c.b16 %v618, %v614
        %v659 = vpack.c.b16 %v623, %v619
        %v660 = vpack.c.b16 %v624, %v620
        %v661 = vpack.c.b16 %v625, %v621
        %v662 = vpack.c.b16 %v626, %v622
        %v663 = vpack.c.b16 %v631, %v627
        %v664 = vpack.c.b16 %v632, %v628
        %v665 = vpack.c.b16 %v633, %v629
        %v666 = vpack.c.b16 %v634, %v630
        %699 = vmatprep.subr.bf16.mxu0 %v664
        %700 = vmatpush1.bf16.msra.mxu0 %v663
        %701 = vmatprep.subr.bf16.mxu0 %v660
        %702 = vmatpush1.bf16.msra.mxu0 %v659
        %703 = vmatprep.subr.bf16.mxu0 %v656
        %704 = vmatpush1.bf16.msra.mxu0 %v655
        %705 = vmatprep.subr.bf16.mxu0 %v652
        %706 = vmatpush1.bf16.msra.mxu0 %v651
        %707 = vmatprep.subr.bf16.mxu0 %v648
        %708 = vmatpush1.bf16.msra.mxu0 %v647
        %709 = vmatprep.subr.bf16.mxu0 %v644
        %710 = vmatpush1.bf16.msra.mxu0 %v643
        %711 = vmatprep.subr.bf16.mxu0 %v640
        %712 = vmatpush1.bf16.msra.mxu0 %v639
        %713 = vmatprep.subr.bf16.mxu0 %v636
        %714 = vmatpush1.bf16.msra.mxu0 %v635
        %715 = vmatprep.subr.bf16.mxu0 0
        %716 = vmatpush2.bf16.msra.mxu0 0
        %717 = vmatprep.subr.bf16.mxu0 0
        %718 = vmatpush2.bf16.msra.mxu0 0
        %719 = vmatprep.subr.bf16.mxu0 0
        %720 = vmatpush2.bf16.msra.mxu0 0
        %721 = vmatprep.subr.bf16.mxu0 0
        %722 = vmatpush2.bf16.msra.mxu0 0
        %723 = vmatprep.subr.bf16.mxu0 0
        %724 = vmatpush2.bf16.msra.mxu0 0
        %725 = vmatprep.subr.bf16.mxu0 0
        %726 = vmatpush2.bf16.msra.mxu0 0
        %727 = vmatprep.subr.bf16.mxu0 0
        %728 = vmatpush2.bf16.msra.mxu0 0
        %729 = vmatprep.subr.bf16.mxu0 0
        %730 = vmatpush2.bf16.msra.mxu0 0
        %731 = vmatprep.mubr.bf16.mxu0 0
        %732 = vmatmul.mubr.bf16.gmra.mxu0 %v535
        %v733 = vpop.f32.mrf.mxu0
        %v734 = vadd.f32 %v510, %v733
        %v735 = vpop.f32.mrf.mxu0
        %v736 = vadd.f32 %v514, %v735
        %v737 = vpop.f32.mrf.mxu0
        %v738 = vadd.f32 %v510, %v737
        %v739 = vpop.f32.mrf.mxu0
        %v740 = vadd.f32 %v514, %v739
        %741 = vmatprep.mubr.bf16.mxu0 0
        %742 = vmatmul.mubr.bf16.gmra.mxu0 %v536
        %v743 = vpop.f32.mrf.mxu0
        %v744 = vadd.f32 %v510, %v743
        %v745 = vpop.f32.mrf.mxu0
        %v746 = vadd.f32 %v514, %v745
        %v747 = vpop.f32.mrf.mxu0
        %v748 = vadd.f32 %v510, %v747
        %v749 = vpop.f32.mrf.mxu0
        %v750 = vadd.f32 %v514, %v749
        %751 = vdwg.mxu0
        %752 = vmatprep.subr.bf16.mxu0 %v666
        %753 = vmatpush1.bf16.msra.mxu0 %v665
        %754 = vmatprep.subr.bf16.mxu0 %v662
        %755 = vmatpush1.bf16.msra.mxu0 %v661
        %756 = vmatprep.subr.bf16.mxu0 %v658
        %757 = vmatpush1.bf16.msra.mxu0 %v657
        %758 = vmatprep.subr.bf16.mxu0 %v654
        %759 = vmatpush1.bf16.msra.mxu0 %v653
        %760 = vmatprep.subr.bf16.mxu0 %v650
        %761 = vmatpush1.bf16.msra.mxu0 %v649
        %762 = vmatprep.subr.bf16.mxu0 %v646
        %763 = vmatpush1.bf16.msra.mxu0 %v645
        %764 = vmatprep.subr.bf16.mxu0 %v642
        %765 = vmatpush1.bf16.msra.mxu0 %v641
        %766 = vmatprep.subr.bf16.mxu0 %v638
        %767 = vmatpush1.bf16.msra.mxu0 %v637
        %768 = vmatprep.subr.bf16.mxu0 0
        %769 = vmatpush2.bf16.msra.mxu0 0
        %770 = vmatprep.subr.bf16.mxu0 0
        %771 = vmatpush2.bf16.msra.mxu0 0
        %772 = vmatprep.subr.bf16.mxu0 0
        %773 = vmatpush2.bf16.msra.mxu0 0
        %774 = vmatprep.subr.bf16.mxu0 0
        %775 = vmatpush2.bf16.msra.mxu0 0
        %776 = vmatprep.subr.bf16.mxu0 0
        %777 = vmatpush2.bf16.msra.mxu0 0
        %778 = vmatprep.subr.bf16.mxu0 0
        %779 = vmatpush2.bf16.msra.mxu0 0
        %780 = vmatprep.subr.bf16.mxu0 0
        %781 = vmatpush2.bf16.msra.mxu0 0
        %782 = vmatprep.subr.bf16.mxu0 0
        %783 = vmatpush2.bf16.msra.mxu0 0
        %784 = vmatprep.mubr.bf16.mxu0 0
        %785 = vmatmul.mubr.bf16.gmra.mxu0 %v535
        %v786 = vpop.f32.mrf.mxu0
        %v787 = vadd.f32 %v518, %v786
        %v788 = vpop.f32.mrf.mxu0
        %v789 = vadd.f32 %v522, %v788
        %v790 = vpop.f32.mrf.mxu0
        %v791 = vadd.f32 %v518, %v790
        %v792 = vpop.f32.mrf.mxu0
        %v793 = vadd.f32 %v522, %v792
        %794 = vmatprep.mubr.bf16.mxu0 0
        %795 = vmatmul.mubr.bf16.gmra.mxu0 %v536
        %v796 = vpop.f32.mrf.mxu0
        %v797 = vadd.f32 %v518, %v796
        %v798 = vpop.f32.mrf.mxu0
        %v799 = vadd.f32 %v522, %v798
        %v800 = vpop.f32.mrf.mxu0
        %v801 = vadd.f32 %v518, %v800
        %v802 = vpop.f32.mrf.mxu0
        %v803 = vadd.f32 %v522, %v802
        %804 = vdwg.mxu0
        %805 = vst [vmem:[#allocation3] sm:$0xff] %v734
        %806 = vst [vmem:[#allocation3 + $0x8] sm:$0xff] %v736
        %807 = vst [vmem:[#allocation3 + $0x10] sm:$0xff] %v787
        %808 = vst [vmem:[#allocation3 + $0x18] sm:$0xff] %v789
        %809 = vst [vmem:[#allocation3 + $0x20] sm:$0xff] %v738
        %810 = vst [vmem:[#allocation3 + $0x28] sm:$0xff] %v740
        %811 = vst [vmem:[#allocation3 + $0x30] sm:$0xff] %v791
        %812 = vst [vmem:[#allocation3 + $0x38] sm:$0xff] %v793
        %813 = vst [vmem:[#allocation3 + $0x40] sm:$0xff] %v744
        %814 = vst [vmem:[#allocation3 + $0x48] sm:$0xff] %v746
        %815 = vst [vmem:[#allocation3 + $0x50] sm:$0xff] %v797
        %816 = vst [vmem:[#allocation3 + $0x58] sm:$0xff] %v799
        %817 = vst [vmem:[#allocation3 + $0x60] sm:$0xff] %v748
        %818 = vst [vmem:[#allocation3 + $0x68] sm:$0xff] %v750
        %819 = vst [vmem:[#allocation3 + $0x70] sm:$0xff] %v801
        %820 = vst [vmem:[#allocation3 + $0x78] sm:$0xff] %v803
        %v821 = vld [vmem:[#allocation4] sm:$0xff]
        %v822 = vld [vmem:[#allocation5] sm:$0xff]
        %s823 = smul.u32 0, 4
        %s824 = smul.addr %s823, 8
        %s825 = scalar_lea.vmem [#allocation3], %s824
        %v826 = vld [vmem:[%s825] sm:$0xff]
        %v827 = vld [vmem:[%s825 + $0x8] sm:$0xff]
        %v828 = vld [vmem:[%s825 + $0x10] sm:$0xff]
        %v829 = vld [vmem:[%s825 + $0x18] sm:$0xff]
        %v830 = vpack.c.bf16 %v821, %v821
        %v863 = vunpack.c.l.b16 %v437
        %v864 = vunpack.c.h.b16 %v437
        %v865 = vunpack.c.l.b16 %v438
        %v866 = vunpack.c.h.b16 %v438
        %v867 = vunpack.c.l.b16 %v439
        %v868 = vunpack.c.h.b16 %v439
        %v869 = vunpack.c.l.b16 %v440
        %v870 = vunpack.c.h.b16 %v440
        %v871 = vunpack.c.l.b16 %v441
        %v872 = vunpack.c.h.b16 %v441
        %v873 = vunpack.c.l.b16 %v442
        %v874 = vunpack.c.h.b16 %v442
        %v875 = vunpack.c.l.b16 %v443
        %v876 = vunpack.c.h.b16 %v443
        %v877 = vunpack.c.l.b16 %v444
        %v878 = vunpack.c.h.b16 %v444
        %v879 = vunpack.c.l.b16 %v445
        %v880 = vunpack.c.h.b16 %v445
        %v881 = vunpack.c.l.b16 %v446
        %v882 = vunpack.c.h.b16 %v446
        %v883 = vunpack.c.l.b16 %v447
        %v884 = vunpack.c.h.b16 %v447
        %v885 = vunpack.c.l.b16 %v448
        %v886 = vunpack.c.h.b16 %v448
        %v887 = vunpack.c.l.b16 %v449
        %v888 = vunpack.c.h.b16 %v449
        %v889 = vunpack.c.l.b16 %v450
        %v890 = vunpack.c.h.b16 %v450
        %v891 = vunpack.c.l.b16 %v451
        %v892 = vunpack.c.h.b16 %v451
        %v893 = vunpack.c.l.b16 %v452
        %v894 = vunpack.c.h.b16 %v452
        %v895 = vunpack.c.l.b16 %v453
        %v896 = vunpack.c.h.b16 %v453
        %v897 = vunpack.c.l.b16 %v454
        %v898 = vunpack.c.h.b16 %v454
        %v899 = vunpack.c.l.b16 %v455
        %v900 = vunpack.c.h.b16 %v455
        %v901 = vunpack.c.l.b16 %v456
        %v902 = vunpack.c.h.b16 %v456
        %v903 = vunpack.c.l.b16 %v457
        %v904 = vunpack.c.h.b16 %v457
        %v905 = vunpack.c.l.b16 %v458
        %v906 = vunpack.c.h.b16 %v458
        %v907 = vunpack.c.l.b16 %v459
        %v908 = vunpack.c.h.b16 %v459
        %v909 = vunpack.c.l.b16 %v460
        %v910 = vunpack.c.h.b16 %v460
        %v911 = vunpack.c.l.b16 %v461
        %v912 = vunpack.c.h.b16 %v461
        %v913 = vunpack.c.l.b16 %v462
        %v914 = vunpack.c.h.b16 %v462
        %v915 = vunpack.c.l.b16 %v463
        %v916 = vunpack.c.h.b16 %v463
        %v917 = vunpack.c.l.b16 %v464
        %v918 = vunpack.c.h.b16 %v464
        %v919 = vunpack.c.l.b16 %v465
        %v920 = vunpack.c.h.b16 %v465
        %v921 = vunpack.c.l.b16 %v466
        %v922 = vunpack.c.h.b16 %v466
        %v923 = vunpack.c.l.b16 %v467
        %v924 = vunpack.c.h.b16 %v467
        %v925 = vunpack.c.l.b16 %v468
        %v926 = vunpack.c.h.b16 %v468
        %v927 = vpack.c.b16 %v867, %v863
        %v928 = vpack.c.b16 %v868, %v864
        %v929 = vpack.c.b16 %v869, %v865
        %v930 = vpack.c.b16 %v870, %v866
        %v931 = vpack.c.b16 %v875, %v871
        %v932 = vpack.c.b16 %v876, %v872
        %v933 = vpack.c.b16 %v877, %v873
        %v934 = vpack.c.b16 %v878, %v874
        %v935 = vpack.c.b16 %v883, %v879
        %v936 = vpack.c.b16 %v884, %v880
        %v937 = vpack.c.b16 %v885, %v881
        %v938 = vpack.c.b16 %v886, %v882
        %v939 = vpack.c.b16 %v891, %v887
        %v940 = vpack.c.b16 %v892, %v888
        %v941 = vpack.c.b16 %v893, %v889
        %v942 = vpack.c.b16 %v894, %v890
        %v943 = vpack.c.b16 %v899, %v895
        %v944 = vpack.c.b16 %v900, %v896
        %v945 = vpack.c.b16 %v901, %v897
        %v946 = vpack.c.b16 %v902, %v898
        %v947 = vpack.c.b16 %v907, %v903
        %v948 = vpack.c.b16 %v908, %v904
        %v949 = vpack.c.b16 %v909, %v905
        %v950 = vpack.c.b16 %v910, %v906
        %v951 = vpack.c.b16 %v915, %v911
        %v952 = vpack.c.b16 %v916, %v912
        %v953 = vpack.c.b16 %v917, %v913
        %v954 = vpack.c.b16 %v918, %v914
        %v955 = vpack.c.b16 %v923, %v919
        %v956 = vpack.c.b16 %v924, %v920
        %v957 = vpack.c.b16 %v925, %v921
        %v958 = vpack.c.b16 %v926, %v922
        %991 = vmatprep.subr.bf16.mxu0 %v956
        %992 = vmatpush1.bf16.msra.mxu0 %v955
        %993 = vmatprep.subr.bf16.mxu0 %v952
        %994 = vmatpush1.bf16.msra.mxu0 %v951
        %995 = vmatprep.subr.bf16.mxu0 %v948
        %996 = vmatpush1.bf16.msra.mxu0 %v947
        %997 = vmatprep.subr.bf16.mxu0 %v944
        %998 = vmatpush1.bf16.msra.mxu0 %v943
        %999 = vmatprep.subr.bf16.mxu0 %v940
        %1000 = vmatpush1.bf16.msra.mxu0 %v939
        %1001 = vmatprep.subr.bf16.mxu0 %v936
        %1002 = vmatpush1.bf16.msra.mxu0 %v935
        %1003 = vmatprep.subr.bf16.mxu0 %v932
        %1004 = vmatpush1.bf16.msra.mxu0 %v931
        %1005 = vmatprep.subr.bf16.mxu0 %v928
        %1006 = vmatpush1.bf16.msra.mxu0 %v927
        %1007 = vmatprep.subr.bf16.mxu0 0
        %1008 = vmatpush2.bf16.msra.mxu0 0
        %1009 = vmatprep.subr.bf16.mxu0 0
        %1010 = vmatpush2.bf16.msra.mxu0 0
        %1011 = vmatprep.subr.bf16.mxu0 0
        %1012 = vmatpush2.bf16.msra.mxu0 0
        %1013 = vmatprep.subr.bf16.mxu0 0
        %1014 = vmatpush2.bf16.msra.mxu0 0
        %1015 = vmatprep.subr.bf16.mxu0 0
        %1016 = vmatpush2.bf16.msra.mxu0 0
        %1017 = vmatprep.subr.bf16.mxu0 0
        %1018 = vmatpush2.bf16.msra.mxu0 0
        %1019 = vmatprep.subr.bf16.mxu0 0
        %1020 = vmatpush2.bf16.msra.mxu0 0
        %1021 = vmatprep.subr.bf16.mxu0 0
        %1022 = vmatpush2.bf16.msra.mxu0 0
        %1023 = vmatprep.mubr.bf16.mxu0 0
        %1024 = vmatmul.mubr.bf16.gmra.mxu0 %v830
        %v1025 = vpop.f32.mrf.mxu0
        %v1026 = vadd.f32 0.0, %v1025
        %v1027 = vpop.f32.mrf.mxu0
        %v1028 = vadd.f32 0.0, %v1027
        %v1029 = vpop.f32.mrf.mxu0
        %v1030 = vpop.f32.mrf.mxu0
        %1031 = vdwg.mxu0
        %1032 = vmatprep.subr.bf16.mxu0 %v958
        %1033 = vmatpush1.bf16.msra.mxu0 %v957
        %1034 = vmatprep.subr.bf16.mxu0 %v954
        %1035 = vmatpush1.bf16.msra.mxu0 %v953
        %1036 = vmatprep.subr.bf16.mxu0 %v950
        %1037 = vmatpush1.bf16.msra.mxu0 %v949
        %1038 = vmatprep.subr.bf16.mxu0 %v946
        %1039 = vmatpush1.bf16.msra.mxu0 %v945
        %1040 = vmatprep.subr.bf16.mxu0 %v942
        %1041 = vmatpush1.bf16.msra.mxu0 %v941
        %1042 = vmatprep.subr.bf16.mxu0 %v938
        %1043 = vmatpush1.bf16.msra.mxu0 %v937
        %1044 = vmatprep.subr.bf16.mxu0 %v934
        %1045 = vmatpush1.bf16.msra.mxu0 %v933
        %1046 = vmatprep.subr.bf16.mxu0 %v930
        %1047 = vmatpush1.bf16.msra.mxu0 %v929
        %1048 = vmatprep.subr.bf16.mxu0 0
        %1049 = vmatpush2.bf16.msra.mxu0 0
        %1050 = vmatprep.subr.bf16.mxu0 0
        %1051 = vmatpush2.bf16.msra.mxu0 0
        %1052 = vmatprep.subr.bf16.mxu0 0
        %1053 = vmatpush2.bf16.msra.mxu0 0
        %1054 = vmatprep.subr.bf16.mxu0 0
        %1055 = vmatpush2.bf16.msra.mxu0 0
        %1056 = vmatprep.subr.bf16.mxu0 0
        %1057 = vmatpush2.bf16.msra.mxu0 0
        %1058 = vmatprep.subr.bf16.mxu0 0
        %1059 = vmatpush2.bf16.msra.mxu0 0
        %1060 = vmatprep.subr.bf16.mxu0 0
        %1061 = vmatpush2.bf16.msra.mxu0 0
        %1062 = vmatprep.subr.bf16.mxu0 0
        %1063 = vmatpush2.bf16.msra.mxu0 0
        %1064 = vmatprep.mubr.bf16.mxu0 0
        %1065 = vmatmul.mubr.bf16.gmra.mxu0 %v830
        %v1066 = vpop.f32.mrf.mxu0
        %v1067 = vadd.f32 0.0, %v1066
        %v1068 = vpop.f32.mrf.mxu0
        %v1069 = vadd.f32 0.0, %v1068
        %v1070 = vpop.f32.mrf.mxu0
        %v1071 = vpop.f32.mrf.mxu0
        %1072 = vdwg.mxu0
        %v1073 = vadd.f32 %v826, %v1026
        %v1074 = vadd.f32 %v827, %v1028
        %v1075 = vadd.f32 %v828, %v1067
        %v1076 = vadd.f32 %v829, %v1069
        %v1077 = vxor.u32 %v1073, 2147483648
        %v1078 = vmul.f32 %v1077, 1.442695
        %v1079 = vpow.pop %v1078
        %v1080 = vadd.f32 %v1079, 1.0
        %v1081 = vrcp.pop %v1080
        %v1082 = vmul.f32 1.0, %v1081
        %v1083 = vxor.u32 %v1074, 2147483648
        %v1084 = vmul.f32 %v1083, 1.442695
        %v1085 = vpow.pop %v1084
        %v1086 = vadd.f32 %v1085, 1.0
        %v1087 = vrcp.pop %v1086
        %v1088 = vmul.f32 1.0, %v1087
        %v1089 = vtanh.pop %v1075
        %v1090 = vxor.u32 %v1076, 2147483648
        %v1091 = vmul.f32 %v1090, 1.442695
        %v1092 = vpow.pop %v1091
        %v1093 = vadd.f32 %v1092, 1.0
        %v1094 = vrcp.pop %v1093
        %v1095 = vmul.f32 1.0, %v1094
        %v1096 = vmul.f32 %v1088, %v822
        %v1097 = vmul.f32 %v1082, %v1089
        %v1098 = vadd.f32 %v1096, %v1097
        %v1099 = vtanh.pop %v1098
        %v1100 = vmul.f32 %v1095, %v1099
        %1101 = vst [vmem:[#allocation2] sm:$0xff] %v1100
        %s1102 = smul.u32 1, 4
        %s1103 = smul.addr %s1102, 8
        %s1104 = scalar_lea.vmem [#allocation3], %s1103
        %v1105 = vld [vmem:[%s1104] sm:$0xff]
        %v1106 = vld [vmem:[%s1104 + $0x8] sm:$0xff]
        %v1107 = vld [vmem:[%s1104 + $0x10] sm:$0xff]
        %v1108 = vld [vmem:[%s1104 + $0x18] sm:$0xff]
        %v1109 = vpack.c.bf16 %v1100, %v1100
        %1110 = vmatprep.subr.bf16.mxu0 %v956
        %1111 = vmatpush1.bf16.msra.mxu0 %v955
        %1112 = vmatprep.subr.bf16.mxu0 %v952
        %1113 = vmatpush1.bf16.msra.mxu0 %v951
        %1114 = vmatprep.subr.bf16.mxu0 %v948
        %1115 = vmatpush1.bf16.msra.mxu0 %v947
        %1116 = vmatprep.subr.bf16.mxu0 %v944
        %1117 = vmatpush1.bf16.msra.mxu0 %v943
        %1118 = vmatprep.subr.bf16.mxu0 %v940
        %1119 = vmatpush1.bf16.msra.mxu0 %v939
        %1120 = vmatprep.subr.bf16.mxu0 %v936
        %1121 = vmatpush1.bf16.msra.mxu0 %v935
        %1122 = vmatprep.subr.bf16.mxu0 %v932
        %1123 = vmatpush1.bf16.msra.mxu0 %v931
        %1124 = vmatprep.subr.bf16.mxu0 %v928
        %1125 = vmatpush1.bf16.msra.mxu0 %v927
        %1126 = vmatprep.subr.bf16.mxu0 0
        %1127 = vmatpush2.bf16.msra.mxu0 0
        %1128 = vmatprep.subr.bf16.mxu0 0
        %1129 = vmatpush2.bf16.msra.mxu0 0
        %1130 = vmatprep.subr.bf16.mxu0 0
        %1131 = vmatpush2.bf16.msra.mxu0 0
        %1132 = vmatprep.subr.bf16.mxu0 0
        %1133 = vmatpush2.bf16.msra.mxu0 0
        %1134 = vmatprep.subr.bf16.mxu0 0
        %1135 = vmatpush2.bf16.msra.mxu0 0
        %1136 = vmatprep.subr.bf16.mxu0 0
        %1137 = vmatpush2.bf16.msra.mxu0 0
        %1138 = vmatprep.subr.bf16.mxu0 0
        %1139 = vmatpush2.bf16.msra.mxu0 0
        %1140 = vmatprep.subr.bf16.mxu0 0
        %1141 = vmatpush2.bf16.msra.mxu0 0
        %1142 = vmatprep.mubr.bf16.mxu0 0
        %1143 = vmatmul.mubr.bf16.gmra.mxu0 %v1109
        %v1144 = vpop.f32.mrf.mxu0
        %v1145 = vadd.f32 0.0, %v1144
        %v1146 = vpop.f32.mrf.mxu0
        %v1147 = vadd.f32 0.0, %v1146
        %v1148 = vpop.f32.mrf.mxu0
        %v1149 = vpop.f32.mrf.mxu0
        %1150 = vdwg.mxu0
        %1151 = vmatprep.subr.bf16.mxu0 %v958
        %1152 = vmatpush1.bf16.msra.mxu0 %v957
        %1153 = vmatprep.subr.bf16.mxu0 %v954
        %1154 = vmatpush1.bf16.msra.mxu0 %v953
        %1155 = vmatprep.subr.bf16.mxu0 %v950
        %1156 = vmatpush1.bf16.msra.mxu0 %v949
        %1157 = vmatprep.subr.bf16.mxu0 %v946
        %1158 = vmatpush1.bf16.msra.mxu0 %v945
        %1159 = vmatprep.subr.bf16.mxu0 %v942
        %1160 = vmatpush1.bf16.msra.mxu0 %v941
        %1161 = vmatprep.subr.bf16.mxu0 %v938
        %1162 = vmatpush1.bf16.msra.mxu0 %v937
        %1163 = vmatprep.subr.bf16.mxu0 %v934
        %1164 = vmatpush1.bf16.msra.mxu0 %v933
        %1165 = vmatprep.subr.bf16.mxu0 %v930
        %1166 = vmatpush1.bf16.msra.mxu0 %v929
        %1167 = vmatprep.subr.bf16.mxu0 0
        %1168 = vmatpush2.bf16.msra.mxu0 0
        %1169 = vmatprep.subr.bf16.mxu0 0
        %1170 = vmatpush2.bf16.msra.mxu0 0
        %1171 = vmatprep.subr.bf16.mxu0 0
        %1172 = vmatpush2.bf16.msra.mxu0 0
        %1173 = vmatprep.subr.bf16.mxu0 0
        %1174 = vmatpush2.bf16.msra.mxu0 0
        %1175 = vmatprep.subr.bf16.mxu0 0
        %1176 = vmatpush2.bf16.msra.mxu0 0
        %1177 = vmatprep.subr.bf16.mxu0 0
        %1178 = vmatpush2.bf16.msra.mxu0 0
        %1179 = vmatprep.subr.bf16.mxu0 0
        %1180 = vmatpush2.bf16.msra.mxu0 0
        %1181 = vmatprep.subr.bf16.mxu0 0
        %1182 = vmatpush2.bf16.msra.mxu0 0
        %1183 = vmatprep.mubr.bf16.mxu0 0
        %1184 = vmatmul.mubr.bf16.gmra.mxu0 %v1109
        %v1185 = vpop.f32.mrf.mxu0
        %v1186 = vadd.f32 0.0, %v1185
        %v1187 = vpop.f32.mrf.mxu0
        %v1188 = vadd.f32 0.0, %v1187
        %v1189 = vpop.f32.mrf.mxu0
        %v1190 = vpop.f32.mrf.mxu0
        %1191 = vdwg.mxu0
        %v1192 = vadd.f32 %v1105, %v1145
        %v1193 = vadd.f32 %v1106, %v1147
        %v1194 = vadd.f32 %v1107, %v1186
        %v1195 = vadd.f32 %v1108, %v1188
        %v1196 = vxor.u32 %v1192, 2147483648
        %v1197 = vmul.f32 %v1196, 1.442695
        %v1198 = vpow.pop %v1197
        %v1199 = vadd.f32 %v1198, 1.0
        %v1200 = vrcp.pop %v1199
        %v1201 = vmul.f32 1.0, %v1200
        %v1202 = vxor.u32 %v1193, 2147483648
        %v1203 = vmul.f32 %v1202, 1.442695
        %v1204 = vpow.pop %v1203
        %v1205 = vadd.f32 %v1204, 1.0
        %v1206 = vrcp.pop %v1205
        %v1207 = vmul.f32 1.0, %v1206
        %v1208 = vtanh.pop %v1194
        %v1209 = vxor.u32 %v1195, 2147483648
        %v1210 = vmul.f32 %v1209, 1.442695
        %v1211 = vpow.pop %v1210
        %v1212 = vadd.f32 %v1211, 1.0
        %v1213 = vrcp.pop %v1212
        %v1214 = vmul.f32 1.0, %v1213
        %v1215 = vmul.f32 %v1207, %v1098
        %v1216 = vmul.f32 %v1201, %v1208
        %v1217 = vadd.f32 %v1215, %v1216
        %v1218 = vtanh.pop %v1217
        %v1219 = vmul.f32 %v1214, %v1218
        %s1220 = scalar_lea.vmem [#allocation2], 8
        %1221 = vst [vmem:[%s1220] sm:$0xff] %v1219
        %s1222 = smul.u32 2, 4
        %s1223 = smul.addr %s1222, 8
        %s1224 = scalar_lea.vmem [#allocation3], %s1223
        %v1225 = vld [vmem:[%s1224] sm:$0xff]
        %v1226 = vld [vmem:[%s1224 + $0x8] sm:$0xff]
        %v1227 = vld [vmem:[%s1224 + $0x10] sm:$0xff]
        %v1228 = vld [vmem:[%s1224 + $0x18] sm:$0xff]
        %v1229 = vpack.c.bf16 %v1219, %v1219
        %1230 = vmatprep.subr.bf16.mxu0 %v956
        %1231 = vmatpush1.bf16.msra.mxu0 %v955
        %1232 = vmatprep.subr.bf16.mxu0 %v952
        %1233 = vmatpush1.bf16.msra.mxu0 %v951
        %1234 = vmatprep.subr.bf16.mxu0 %v948
        %1235 = vmatpush1.bf16.msra.mxu0 %v947
        %1236 = vmatprep.subr.bf16.mxu0 %v944
        %1237 = vmatpush1.bf16.msra.mxu0 %v943
        %1238 = vmatprep.subr.bf16.mxu0 %v940
        %1239 = vmatpush1.bf16.msra.mxu0 %v939
        %1240 = vmatprep.subr.bf16.mxu0 %v936
        %1241 = vmatpush1.bf16.msra.mxu0 %v935
        %1242 = vmatprep.subr.bf16.mxu0 %v932
        %1243 = vmatpush1.bf16.msra.mxu0 %v931
        %1244 = vmatprep.subr.bf16.mxu0 %v928
        %1245 = vmatpush1.bf16.msra.mxu0 %v927
        %1246 = vmatprep.subr.bf16.mxu0 0
        %1247 = vmatpush2.bf16.msra.mxu0 0
        %1248 = vmatprep.subr.bf16.mxu0 0
        %1249 = vmatpush2.bf16.msra.mxu0 0
        %1250 = vmatprep.subr.bf16.mxu0 0
        %1251 = vmatpush2.bf16.msra.mxu0 0
        %1252 = vmatprep.subr.bf16.mxu0 0
        %1253 = vmatpush2.bf16.msra.mxu0 0
        %1254 = vmatprep.subr.bf16.mxu0 0
        %1255 = vmatpush2.bf16.msra.mxu0 0
        %1256 = vmatprep.subr.bf16.mxu0 0
        %1257 = vmatpush2.bf16.msra.mxu0 0
        %1258 = vmatprep.subr.bf16.mxu0 0
        %1259 = vmatpush2.bf16.msra.mxu0 0
        %1260 = vmatprep.subr.bf16.mxu0 0
        %1261 = vmatpush2.bf16.msra.mxu0 0
        %1262 = vmatprep.mubr.bf16.mxu0 0
        %1263 = vmatmul.mubr.bf16.gmra.mxu0 %v1229
        %v1264 = vpop.f32.mrf.mxu0
        %v1265 = vadd.f32 0.0, %v1264
        %v1266 = vpop.f32.mrf.mxu0
        %v1267 = vadd.f32 0.0, %v1266
        %v1268 = vpop.f32.mrf.mxu0
        %v1269 = vpop.f32.mrf.mxu0
        %1270 = vdwg.mxu0
        %1271 = vmatprep.subr.bf16.mxu0 %v958
        %1272 = vmatpush1.bf16.msra.mxu0 %v957
        %1273 = vmatprep.subr.bf16.mxu0 %v954
        %1274 = vmatpush1.bf16.msra.mxu0 %v953
        %1275 = vmatprep.subr.bf16.mxu0 %v950
        %1276 = vmatpush1.bf16.msra.mxu0 %v949
        %1277 = vmatprep.subr.bf16.mxu0 %v946
        %1278 = vmatpush1.bf16.msra.mxu0 %v945
        %1279 = vmatprep.subr.bf16.mxu0 %v942
        %1280 = vmatpush1.bf16.msra.mxu0 %v941
        %1281 = vmatprep.subr.bf16.mxu0 %v938
        %1282 = vmatpush1.bf16.msra.mxu0 %v937
        %1283 = vmatprep.subr.bf16.mxu0 %v934
        %1284 = vmatpush1.bf16.msra.mxu0 %v933
        %1285 = vmatprep.subr.bf16.mxu0 %v930
        %1286 = vmatpush1.bf16.msra.mxu0 %v929
        %1287 = vmatprep.subr.bf16.mxu0 0
        %1288 = vmatpush2.bf16.msra.mxu0 0
        %1289 = vmatprep.subr.bf16.mxu0 0
        %1290 = vmatpush2.bf16.msra.mxu0 0
        %1291 = vmatprep.subr.bf16.mxu0 0
        %1292 = vmatpush2.bf16.msra.mxu0 0
        %1293 = vmatprep.subr.bf16.mxu0 0
        %1294 = vmatpush2.bf16.msra.mxu0 0
        %1295 = vmatprep.subr.bf16.mxu0 0
        %1296 = vmatpush2.bf16.msra.mxu0 0
        %1297 = vmatprep.subr.bf16.mxu0 0
        %1298 = vmatpush2.bf16.msra.mxu0 0
        %1299 = vmatprep.subr.bf16.mxu0 0
        %1300 = vmatpush2.bf16.msra.mxu0 0
        %1301 = vmatprep.subr.bf16.mxu0 0
        %1302 = vmatpush2.bf16.msra.mxu0 0
        %1303 = vmatprep.mubr.bf16.mxu0 0
        %1304 = vmatmul.mubr.bf16.gmra.mxu0 %v1229
        %v1305 = vpop.f32.mrf.mxu0
        %v1306 = vadd.f32 0.0, %v1305
        %v1307 = vpop.f32.mrf.mxu0
        %v1308 = vadd.f32 0.0, %v1307
        %v1309 = vpop.f32.mrf.mxu0
        %v1310 = vpop.f32.mrf.mxu0
        %1311 = vdwg.mxu0
        %v1312 = vadd.f32 %v1225, %v1265
        %v1313 = vadd.f32 %v1226, %v1267
        %v1314 = vadd.f32 %v1227, %v1306
        %v1315 = vadd.f32 %v1228, %v1308
        %v1316 = vxor.u32 %v1312, 2147483648
        %v1317 = vmul.f32 %v1316, 1.442695
        %v1318 = vpow.pop %v1317
        %v1319 = vadd.f32 %v1318, 1.0
        %v1320 = vrcp.pop %v1319
        %v1321 = vmul.f32 1.0, %v1320
        %v1322 = vxor.u32 %v1313, 2147483648
        %v1323 = vmul.f32 %v1322, 1.442695
        %v1324 = vpow.pop %v1323
        %v1325 = vadd.f32 %v1324, 1.0
        %v1326 = vrcp.pop %v1325
        %v1327 = vmul.f32 1.0, %v1326
        %v1328 = vtanh.pop %v1314
        %v1329 = vxor.u32 %v1315, 2147483648
        %v1330 = vmul.f32 %v1329, 1.442695
        %v1331 = vpow.pop %v1330
        %v1332 = vadd.f32 %v1331, 1.0
        %v1333 = vrcp.pop %v1332
        %v1334 = vmul.f32 1.0, %v1333
        %v1335 = vmul.f32 %v1327, %v1217
        %v1336 = vmul.f32 %v1321, %v1328
        %v1337 = vadd.f32 %v1335, %v1336
        %v1338 = vtanh.pop %v1337
        %v1339 = vmul.f32 %v1334, %v1338
        %s1340 = scalar_lea.vmem [#allocation2], 16
        %1341 = vst [vmem:[%s1340] sm:$0xff] %v1339
        %s1342 = smul.u32 3, 4
        %s1343 = smul.addr %s1342, 8
        %s1344 = scalar_lea.vmem [#allocation3], %s1343
        %v1345 = vld [vmem:[%s1344] sm:$0xff]
        %v1346 = vld [vmem:[%s1344 + $0x8] sm:$0xff]
        %v1347 = vld [vmem:[%s1344 + $0x10] sm:$0xff]
        %v1348 = vld [vmem:[%s1344 + $0x18] sm:$0xff]
        %v1349 = vpack.c.bf16 %v1339, %v1339
        %1350 = vmatprep.subr.bf16.mxu0 %v956
        %1351 = vmatpush1.bf16.msra.mxu0 %v955
        %1352 = vmatprep.subr.bf16.mxu0 %v952
        %1353 = vmatpush1.bf16.msra.mxu0 %v951
        %1354 = vmatprep.subr.bf16.mxu0 %v948
        %1355 = vmatpush1.bf16.msra.mxu0 %v947
        %1356 = vmatprep.subr.bf16.mxu0 %v944
        %1357 = vmatpush1.bf16.msra.mxu0 %v943
        %1358 = vmatprep.subr.bf16.mxu0 %v940
        %1359 = vmatpush1.bf16.msra.mxu0 %v939
        %1360 = vmatprep.subr.bf16.mxu0 %v936
        %1361 = vmatpush1.bf16.msra.mxu0 %v935
        %1362 = vmatprep.subr.bf16.mxu0 %v932
        %1363 = vmatpush1.bf16.msra.mxu0 %v931
        %1364 = vmatprep.subr.bf16.mxu0 %v928
        %1365 = vmatpush1.bf16.msra.mxu0 %v927
        %1366 = vmatprep.subr.bf16.mxu0 0
        %1367 = vmatpush2.bf16.msra.mxu0 0
        %1368 = vmatprep.subr.bf16.mxu0 0
        %1369 = vmatpush2.bf16.msra.mxu0 0
        %1370 = vmatprep.subr.bf16.mxu0 0
        %1371 = vmatpush2.bf16.msra.mxu0 0
        %1372 = vmatprep.subr.bf16.mxu0 0
        %1373 = vmatpush2.bf16.msra.mxu0 0
        %1374 = vmatprep.subr.bf16.mxu0 0
        %1375 = vmatpush2.bf16.msra.mxu0 0
        %1376 = vmatprep.subr.bf16.mxu0 0
        %1377 = vmatpush2.bf16.msra.mxu0 0
        %1378 = vmatprep.subr.bf16.mxu0 0
        %1379 = vmatpush2.bf16.msra.mxu0 0
        %1380 = vmatprep.subr.bf16.mxu0 0
        %1381 = vmatpush2.bf16.msra.mxu0 0
        %1382 = vmatprep.mubr.bf16.mxu0 0
        %1383 = vmatmul.mubr.bf16.gmra.mxu0 %v1349
        %v1384 = vpop.f32.mrf.mxu0
        %v1385 = vadd.f32 0.0, %v1384
        %v1386 = vpop.f32.mrf.mxu0
        %v1387 = vadd.f32 0.0, %v1386
        %v1388 = vpop.f32.mrf.mxu0
        %v1389 = vpop.f32.mrf.mxu0
        %1390 = vdwg.mxu0
        %1391 = vmatprep.subr.bf16.mxu0 %v958
        %1392 = vmatpush1.bf16.msra.mxu0 %v957
        %1393 = vmatprep.subr.bf16.mxu0 %v954
        %1394 = vmatpush1.bf16.msra.mxu0 %v953
        %1395 = vmatprep.subr.bf16.mxu0 %v950
        %1396 = vmatpush1.bf16.msra.mxu0 %v949
        %1397 = vmatprep.subr.bf16.mxu0 %v946
        %1398 = vmatpush1.bf16.msra.mxu0 %v945
        %1399 = vmatprep.subr.bf16.mxu0 %v942
        %1400 = vmatpush1.bf16.msra.mxu0 %v941
        %1401 = vmatprep.subr.bf16.mxu0 %v938
        %1402 = vmatpush1.bf16.msra.mxu0 %v937
        %1403 = vmatprep.subr.bf16.mxu0 %v934
        %1404 = vmatpush1.bf16.msra.mxu0 %v933
        %1405 = vmatprep.subr.bf16.mxu0 %v930
        %1406 = vmatpush1.bf16.msra.mxu0 %v929
        %1407 = vmatprep.subr.bf16.mxu0 0
        %1408 = vmatpush2.bf16.msra.mxu0 0
        %1409 = vmatprep.subr.bf16.mxu0 0
        %1410 = vmatpush2.bf16.msra.mxu0 0
        %1411 = vmatprep.subr.bf16.mxu0 0
        %1412 = vmatpush2.bf16.msra.mxu0 0
        %1413 = vmatprep.subr.bf16.mxu0 0
        %1414 = vmatpush2.bf16.msra.mxu0 0
        %1415 = vmatprep.subr.bf16.mxu0 0
        %1416 = vmatpush2.bf16.msra.mxu0 0
        %1417 = vmatprep.subr.bf16.mxu0 0
        %1418 = vmatpush2.bf16.msra.mxu0 0
        %1419 = vmatprep.subr.bf16.mxu0 0
        %1420 = vmatpush2.bf16.msra.mxu0 0
        %1421 = vmatprep.subr.bf16.mxu0 0
        %1422 = vmatpush2.bf16.msra.mxu0 0
        %1423 = vmatprep.mubr.bf16.mxu0 0
        %1424 = vmatmul.mubr.bf16.gmra.mxu0 %v1349
        %v1425 = vpop.f32.mrf.mxu0
        %v1426 = vadd.f32 0.0, %v1425
        %v1427 = vpop.f32.mrf.mxu0
        %v1428 = vadd.f32 0.0, %v1427
        %v1429 = vpop.f32.mrf.mxu0
        %v1430 = vpop.f32.mrf.mxu0
        %1431 = vdwg.mxu0
        %v1432 = vadd.f32 %v1345, %v1385
        %v1433 = vadd.f32 %v1346, %v1387
        %v1434 = vadd.f32 %v1347, %v1426
        %v1435 = vadd.f32 %v1348, %v1428
        %v1436 = vxor.u32 %v1432, 2147483648
        %v1437 = vmul.f32 %v1436, 1.442695
        %v1438 = vpow.pop %v1437
        %v1439 = vadd.f32 %v1438, 1.0
        %v1440 = vrcp.pop %v1439
        %v1441 = vmul.f32 1.0, %v1440
        %v1442 = vxor.u32 %v1433, 2147483648
        %v1443 = vmul.f32 %v1442, 1.442695
        %v1444 = vpow.pop %v1443
        %v1445 = vadd.f32 %v1444, 1.0
        %v1446 = vrcp.pop %v1445
        %v1447 = vmul.f32 1.0, %v1446
        %v1448 = vtanh.pop %v1434
        %v1449 = vxor.u32 %v1435, 2147483648
        %v1450 = vmul.f32 %v1449, 1.442695
        %v1451 = vpow.pop %v1450
        %v1452 = vadd.f32 %v1451, 1.0
        %v1453 = vrcp.pop %v1452
        %v1454 = vmul.f32 1.0, %v1453
        %v1455 = vmul.f32 %v1447, %v1337
        %v1456 = vmul.f32 %v1441, %v1448
        %v1457 = vadd.f32 %v1455, %v1456
        %v1458 = vtanh.pop %v1457
        %v1459 = vmul.f32 %v1454, %v1458
        %s1460 = scalar_lea.vmem [#allocation2], 24
        %1461 = vst [vmem:[%s1460] sm:$0xff] %v1459
        %1462 = vst [vmem:[#allocation4] sm:$0xff] %v1459
        %1463 = vst [vmem:[#allocation5] sm:$0xff] %v1457
        %v1464 = vld [vmem:[#allocation2] sm:$0xff]
        %v1465 = vld [vmem:[#allocation2 + $0x8] sm:$0xff]
        %v1466 = vld [vmem:[#allocation2 + $0x10] sm:$0xff]
        %v1467 = vld [vmem:[#allocation2 + $0x18] sm:$0xff]
        %v1468 = vpack.c.bf16 %v1465, %v1464
        %v1469 = vpack.c.bf16 %v1467, %v1466
        %v1470 = vld [vmem:[#allocation15] sm:$0xf]
        %v1471 = vld [vmem:[#allocation15 + $0x4] sm:$0xf]
        %v1472 = vld [vmem:[#allocation15 + $0x8] sm:$0xf]
        %v1473 = vld [vmem:[#allocation15 + $0xc] sm:$0xf]
        %v1474 = vld [vmem:[#allocation15 + $0x10] sm:$0xf]
        %v1475 = vld [vmem:[#allocation15 + $0x14] sm:$0xf]
        %v1476 = vld [vmem:[#allocation15 + $0x18] sm:$0xf]
        %v1477 = vld [vmem:[#allocation15 + $0x1c] sm:$0xf]
        %v1478 = vld [vmem:[#allocation15 + $0x20] sm:$0xf]
        %v1479 = vld [vmem:[#allocation15 + $0x24] sm:$0xf]
        %v1480 = vld [vmem:[#allocation15 + $0x28] sm:$0xf]
        %v1481 = vld [vmem:[#allocation15 + $0x2c] sm:$0xf]
        %v1482 = vld [vmem:[#allocation15 + $0x30] sm:$0xf]
        %v1483 = vld [vmem:[#allocation15 + $0x34] sm:$0xf]
        %v1484 = vld [vmem:[#allocation15 + $0x38] sm:$0xf]
        %v1485 = vld [vmem:[#allocation15 + $0x3c] sm:$0xf]
        %v1486 = vld [vmem:[%s5] sm:$0x1]
        %v1488 = vlaneseq
        %v1489 = vshrl.u32 %v1488, 7
        %v1490 = vsub.s32 0, %v1489
        %v1491 = vrot.slane %v1486, %v1490
        %v1509 = vunpack.c.l.b16 %v1470
        %v1510 = vunpack.c.l.b16 %v1471
        %v1511 = vunpack.c.l.b16 %v1472
        %v1512 = vunpack.c.l.b16 %v1473
        %v1513 = vunpack.c.l.b16 %v1474
        %v1514 = vunpack.c.l.b16 %v1475
        %v1515 = vunpack.c.l.b16 %v1476
        %v1516 = vunpack.c.l.b16 %v1477
        %v1517 = vunpack.c.l.b16 %v1478
        %v1518 = vunpack.c.l.b16 %v1479
        %v1519 = vunpack.c.l.b16 %v1480
        %v1520 = vunpack.c.l.b16 %v1481
        %v1521 = vunpack.c.l.b16 %v1482
        %v1522 = vunpack.c.l.b16 %v1483
        %v1523 = vunpack.c.l.b16 %v1484
        %v1524 = vunpack.c.l.b16 %v1485
        %v1525 = vpack.c.b16 %v1510, %v1509
        %v1526 = vpack.c.b16 %v1512, %v1511
        %v1527 = vpack.c.b16 %v1514, %v1513
        %v1528 = vpack.c.b16 %v1516, %v1515
        %v1529 = vpack.c.b16 %v1518, %v1517
        %v1530 = vpack.c.b16 %v1520, %v1519
        %v1531 = vpack.c.b16 %v1522, %v1521
        %v1532 = vpack.c.b16 %v1524, %v1523
        %1541 = vmatprep.subr.bf16.mxu0 0
        %1542 = vmatpush1.bf16.msra.mxu0 %v1532
        %1543 = vmatprep.subr.bf16.mxu0 0
        %1544 = vmatpush1.bf16.msra.mxu0 %v1531
        %1545 = vmatprep.subr.bf16.mxu0 0
        %1546 = vmatpush1.bf16.msra.mxu0 %v1530
        %1547 = vmatprep.subr.bf16.mxu0 0
        %1548 = vmatpush1.bf16.msra.mxu0 %v1529
        %1549 = vmatprep.subr.bf16.mxu0 0
        %1550 = vmatpush1.bf16.msra.mxu0 %v1528
        %1551 = vmatprep.subr.bf16.mxu0 0
        %1552 = vmatpush1.bf16.msra.mxu0 %v1527
        %1553 = vmatprep.subr.bf16.mxu0 0
        %1554 = vmatpush1.bf16.msra.mxu0 %v1526
        %1555 = vmatprep.subr.bf16.mxu0 0
        %1556 = vmatpush1.bf16.msra.mxu0 %v1525
        %1557 = vmatprep.subr.bf16.mxu0 0
        %1558 = vmatpush2.bf16.msra.mxu0 0
        %1559 = vmatprep.subr.bf16.mxu0 0
        %1560 = vmatpush2.bf16.msra.mxu0 0
        %1561 = vmatprep.subr.bf16.mxu0 0
        %1562 = vmatpush2.bf16.msra.mxu0 0
        %1563 = vmatprep.subr.bf16.mxu0 0
        %1564 = vmatpush2.bf16.msra.mxu0 0
        %1565 = vmatprep.subr.bf16.mxu0 0
        %1566 = vmatpush2.bf16.msra.mxu0 0
        %1567 = vmatprep.subr.bf16.mxu0 0
        %1568 = vmatpush2.bf16.msra.mxu0 0
        %1569 = vmatprep.subr.bf16.mxu0 0
        %1570 = vmatpush2.bf16.msra.mxu0 0
        %1571 = vmatprep.subr.bf16.mxu0 0
        %1572 = vmatpush2.bf16.msra.mxu0 0
        %1573 = vmatprep.mubr.bf16.mxu0 0
        %1574 = vmatmul.mubr.bf16.gmra.mxu0 %v1468
        %v1575 = vpop.f32.mrf.mxu0
        %v1576 = vadd.f32 %v1491, %v1575
        %v1577 = vpop.f32.mrf.mxu0
        %v1578 = vpop.f32.mrf.mxu0
        %v1579 = vadd.f32 %v1491, %v1578
        %v1580 = vpop.f32.mrf.mxu0
        %1581 = vmatprep.mubr.bf16.mxu0 0
        %1582 = vmatmul.mubr.bf16.gmra.mxu0 %v1469
        %v1583 = vpop.f32.mrf.mxu0
        %v1584 = vadd.f32 %v1491, %v1583
        %v1585 = vpop.f32.mrf.mxu0
        %v1586 = vpop.f32.mrf.mxu0
        %v1587 = vadd.f32 %v1491, %v1586
        %v1588 = vpop.f32.mrf.mxu0
        %1589 = vdwg.mxu0
        %v1590 = vtanh.pop %v1576
        %v1591 = vtanh.pop %v1579
        %v1592 = vtanh.pop %v1584
        %v1593 = vtanh.pop %v1587
        %v1594 = vld [vmem:[%s6] sm:$0x1]
        %v1596 = vlaneseq
        %v1597 = vshrl.u32 %v1596, 7
        %v1598 = vsub.s32 0, %v1597
        %v1599 = vrot.slane %v1594, %v1598
        %v1601 = vmul.f32 %v1590, %v1599
        %v1602 = vmul.f32 %v1591, %v1599
        %v1603 = vmul.f32 %v1592, %v1599
        %v1604 = vmul.f32 %v1593, %v1599
        %1605 = vadd.xlane.f32.xlu0 %v1601
        %v1606 = vpop.xlane.xlu0 %1605
        %1607 = vadd.xlane.f32.xlu0 %v1602
        %v1608 = vpop.xlane.xlu0 %1607
        %1609 = vadd.xlane.f32.xlu0 %v1603
        %v1610 = vpop.xlane.xlu0 %1609
        %1611 = vadd.xlane.f32.xlu0 %v1604
        %v1612 = vpop.xlane.xlu0 %1611
        %v1613 = vld [vmem:[#allocation6] sm:$0xff]
        %v1614 = vmax.f32 %v1606, %v1608
        %v1615 = vmax.f32 %v1610, %v1612
        %v1616 = vmax.f32 %v1614, %v1615
        %v1617 = vmax.f32 %v1613, %v1616
        %v1618 = vsub.f32 %v1613, %v1617
        %v1619 = vmul.f32 %v1618, 1.442695
        %v1620 = vpow.pop %v1619
        %v1621 = vsub.f32 %v1606, %v1617
        %v1622 = vsub.f32 %v1608, %v1617
        %v1623 = vsub.f32 %v1610, %v1617
        %v1624 = vsub.f32 %v1612, %v1617
        %v1625 = vmul.f32 %v1621, 1.442695
        %v1626 = vpow.pop %v1625
        %v1627 = vmul.f32 %v1622, 1.442695
        %v1628 = vpow.pop %v1627
        %v1629 = vmul.f32 %v1623, 1.442695
        %v1630 = vpow.pop %v1629
        %v1631 = vmul.f32 %v1624, 1.442695
        %v1632 = vpow.pop %v1631
        %v1633 = vld [vmem:[#allocation7] sm:$0xff]
        %v1634 = vmul.f32 %v1620, %v1633
        %vm1635 = vcmask 7168
        %v1636 = vsel %vm1635, %v1626, 0.0
        %v1637 = vsel %vm1635, %v1628, 0.0
        %v1638 = vadd.f32 %v1636, %v1637
        %v1639 = vsel %vm1635, %v1630, 0.0
        %v1640 = vadd.f32 %v1638, %v1639
        %v1641 = vsel %vm1635, %v1632, 0.0
        %v1642 = vadd.f32 %v1640, %v1641
        %v1643 = vadd.f32 %v1634, %v1642
        %1644 = vst.msk [vmem:[#allocation7] sm:$0xff] %vm1635, %v1643
        %v1645 = vld [vmem:[#allocation8] sm:$0xff]
        %1647 = vset.pattern.permute.xlu0 0
        %1648 = vperm.xlu0 %1647, %v1620
        %v1649 = vpop.permute.xlu0 %1648
        %v1651 = vmul.f32 %v1649, %v1645
        %1653 = vset.pattern.permute.xlu0 0
        %1654 = vperm.xlu0 %1653, %v1626
        %v1655 = vpop.permute.xlu0 %1654
        %1658 = vset.pattern.permute.xlu0 0
        %1659 = vperm.xlu0 %1658, %v1628
        %v1660 = vpop.permute.xlu0 %1659
        %1663 = vset.pattern.permute.xlu0 0
        %1664 = vperm.xlu0 %1663, %v1630
        %v1665 = vpop.permute.xlu0 %1664
        %1668 = vset.pattern.permute.xlu0 0
        %1669 = vperm.xlu0 %1668, %v1632
        %v1670 = vpop.permute.xlu0 %1669
        %v1672 = vmul.f32 %v1464, %v1655
        %v1673 = vmul.f32 %v1465, %v1660
        %v1674 = vmul.f32 %v1466, %v1665
        %v1675 = vmul.f32 %v1467, %v1670
        %v1676 = vadd.f32 %v1672, %v1673
        %v1677 = vadd.f32 %v1676, %v1674
        %v1678 = vadd.f32 %v1677, %v1675
        %v1679 = vadd.f32 %v1651, %v1678
        %1680 = vst [vmem:[#allocation8] sm:$0xff] %v1679
        %1681 = vst.msk [vmem:[#allocation6] sm:$0xff] %vm1635, %v1617
        %p1682 = scmp.eq.s32.totalorder %s33, 3
        // Predicated region
        $region81: #{tpu_custom_call.1} parent=55 // pred_check
          %p1683 = pneg %p1682
        $region82: #{tpu_custom_call.1} parent=55 // pred_check_branch
          %1685 = sbr.rel (%p1683) target = $region84
        $region83: #{tpu_custom_call.1} parent=55 // pred_region
          %v1686 = vld [vmem:[#allocation7] sm:$0xff]
          %v1687 = vrcp.pop %v1686
          %v1688 = vld [vmem:[#allocation8] sm:$0xff]
          %1690 = vset.pattern.permute.xlu0 0
          %1691 = vperm.xlu0 %1690, %v1687
          %v1692 = vpop.permute.xlu0 %1691
          %v1694 = vmul.f32 %v1688, %v1692
          %v1695 = vpack.c.bf16 %v1694, %v1694
          %v1696 = vld [vmem:[#allocation17] sm:$0xf]
          %v1697 = vld [vmem:[#allocation17 + $0x4] sm:$0xf]
          %v1698 = vld [vmem:[#allocation17 + $0x8] sm:$0xf]
          %v1699 = vld [vmem:[#allocation17 + $0xc] sm:$0xf]
          %v1700 = vld [vmem:[#allocation17 + $0x10] sm:$0xf]
          %v1701 = vld [vmem:[#allocation17 + $0x14] sm:$0xf]
          %v1702 = vld [vmem:[#allocation17 + $0x18] sm:$0xf]
          %v1703 = vld [vmem:[#allocation17 + $0x1c] sm:$0xf]
          %v1704 = vld [vmem:[#allocation17 + $0x20] sm:$0xf]
          %v1705 = vld [vmem:[#allocation17 + $0x24] sm:$0xf]
          %v1706 = vld [vmem:[#allocation17 + $0x28] sm:$0xf]
          %v1707 = vld [vmem:[#allocation17 + $0x2c] sm:$0xf]
          %v1708 = vld [vmem:[#allocation17 + $0x30] sm:$0xf]
          %v1709 = vld [vmem:[#allocation17 + $0x34] sm:$0xf]
          %v1710 = vld [vmem:[#allocation17 + $0x38] sm:$0xf]
          %v1711 = vld [vmem:[#allocation17 + $0x3c] sm:$0xf]
          %v1712 = vld [vmem:[%s8] sm:$0x1]
          %v1714 = vlaneseq
          %v1715 = vshrl.u32 %v1714, 7
          %v1716 = vsub.s32 0, %v1715
          %v1717 = vrot.slane %v1712, %v1716
          %v1735 = vunpack.c.l.b16 %v1696
          %v1736 = vunpack.c.l.b16 %v1697
          %v1737 = vunpack.c.l.b16 %v1698
          %v1738 = vunpack.c.l.b16 %v1699
          %v1739 = vunpack.c.l.b16 %v1700
          %v1740 = vunpack.c.l.b16 %v1701
          %v1741 = vunpack.c.l.b16 %v1702
          %v1742 = vunpack.c.l.b16 %v1703
          %v1743 = vunpack.c.l.b16 %v1704
          %v1744 = vunpack.c.l.b16 %v1705
          %v1745 = vunpack.c.l.b16 %v1706
          %v1746 = vunpack.c.l.b16 %v1707
          %v1747 = vunpack.c.l.b16 %v1708
          %v1748 = vunpack.c.l.b16 %v1709
          %v1749 = vunpack.c.l.b16 %v1710
          %v1750 = vunpack.c.l.b16 %v1711
          %v1751 = vpack.c.b16 %v1736, %v1735
          %v1752 = vpack.c.b16 %v1738, %v1737
          %v1753 = vpack.c.b16 %v1740, %v1739
          %v1754 = vpack.c.b16 %v1742, %v1741
          %v1755 = vpack.c.b16 %v1744, %v1743
          %v1756 = vpack.c.b16 %v1746, %v1745
          %v1757 = vpack.c.b16 %v1748, %v1747
          %v1758 = vpack.c.b16 %v1750, %v1749
          %1767 = vmatprep.subr.bf16.mxu0 0
          %1768 = vmatpush1.bf16.msra.mxu0 %v1758
          %1769 = vmatprep.subr.bf16.mxu0 0
          %1770 = vmatpush1.bf16.msra.mxu0 %v1757
          %1771 = vmatprep.subr.bf16.mxu0 0
          %1772 = vmatpush1.bf16.msra.mxu0 %v1756
          %1773 = vmatprep.subr.bf16.mxu0 0
          %1774 = vmatpush1.bf16.msra.mxu0 %v1755
          %1775 = vmatprep.subr.bf16.mxu0 0
          %1776 = vmatpush1.bf16.msra.mxu0 %v1754
          %1777 = vmatprep.subr.bf16.mxu0 0
          %1778 = vmatpush1.bf16.msra.mxu0 %v1753
          %1779 = vmatprep.subr.bf16.mxu0 0
          %1780 = vmatpush1.bf16.msra.mxu0 %v1752
          %1781 = vmatprep.subr.bf16.mxu0 0
          %1782 = vmatpush1.bf16.msra.mxu0 %v1751
          %1783 = vmatprep.subr.bf16.mxu0 0
          %1784 = vmatpush2.bf16.msra.mxu0 0
          %1785 = vmatprep.subr.bf16.mxu0 0
          %1786 = vmatpush2.bf16.msra.mxu0 0
          %1787 = vmatprep.subr.bf16.mxu0 0
          %1788 = vmatpush2.bf16.msra.mxu0 0
          %1789 = vmatprep.subr.bf16.mxu0 0
          %1790 = vmatpush2.bf16.msra.mxu0 0
          %1791 = vmatprep.subr.bf16.mxu0 0
          %1792 = vmatpush2.bf16.msra.mxu0 0
          %1793 = vmatprep.subr.bf16.mxu0 0
          %1794 = vmatpush2.bf16.msra.mxu0 0
          %1795 = vmatprep.subr.bf16.mxu0 0
          %1796 = vmatpush2.bf16.msra.mxu0 0
          %1797 = vmatprep.subr.bf16.mxu0 0
          %1798 = vmatpush2.bf16.msra.mxu0 0
          %1799 = vmatprep.mubr.bf16.mxu0 0
          %1800 = vmatmul.mubr.bf16.gmra.mxu0 %v1695
          %v1801 = vpop.f32.mrf.mxu0
          %v1802 = vadd.f32 %v1717, %v1801
          %v1803 = vpop.f32.mrf.mxu0
          %v1804 = vpop.f32.mrf.mxu0
          %v1805 = vpop.f32.mrf.mxu0
          %1806 = vdwg.mxu0
          %1807 = vst [vmem:[%s424] sm:$0xff] %v1802
        $region84: #{tpu_custom_call.1} parent=55 // pred_fallthru
          _
        %s1808 = sand.u32 %s244, 1
        %s1809 = scalar_lea.sflag [#allocation11], %s1808
        %s1810 = sand.u32 %s244, 1
        %s1811 = smul.addr %s1810, 8
        %s1812 = scalar_lea.vmem [#allocation18], %s1811
        // Predicated region
        $region85: #{tpu_custom_call.1} parent=55 // pred_check
          %p1813 = pneg %p254
        $region86: #{tpu_custom_call.1} parent=55 // pred_check_branch
          %1815 = sbr.rel (%p1813) target = $region88
        $region87: #{tpu_custom_call.1} parent=55 // pred_region
          %s1817 = ssub.s32 128, 128
          %1818 = vsyncadd %s1809, %s1817
          %s1819 = smul.addr %s32, 128
          %s1820 = scalar_lea.hbm %s9, %s1819
          %s1822 = sshll.u32 %s1812, 4
          %s1823 = int_to_ptr.vmem [resolvable:$true] %s1822
          %1825 = dma.vmem_to_hbm [thread:$0]  %s1823, 128, %s1820, %s1809
        $region88: #{tpu_custom_call.1} parent=55 // pred_fallthru
          _
      $region56: #{tpu_custom_call.1} parent=5 // pred_fallthru
        _
      %p1826 = scmp.le.s32.totalorder 2, %s23
      // Predicated region
      $region89: #{tpu_custom_call.1} parent=5 // pred_check
        %p1827 = pneg %p1826
      $region90: #{tpu_custom_call.1} parent=5 // pred_check_branch
        %1829 = sbr.rel (%p1827) target = $region92
      $region91: #{tpu_custom_call.1} parent=5 // pred_region
        %s1830 = ssub.s32 %s23, 2
        // Predicated region
        $region93: #{tpu_custom_call.1} parent=91 // pred_check
          %p1831 = pneg %p260
        $region94: #{tpu_custom_call.1} parent=91 // pred_check_branch
          %1833 = sbr.rel (%p1831) target = $region96
        $region95: #{tpu_custom_call.1} parent=91 // pred_region
          %s1834 = sand.u32 %s245, 1
          %s1835 = scalar_lea.sflag [#allocation11], %s1834
          %s1836 = sand.u32 %s245, 1
          %s1837 = smul.addr %s1836, 8
          %s1838 = scalar_lea.vmem [#allocation18], %s1837
          %1839 = dma.done %s1835, 128
        $region96: #{tpu_custom_call.1} parent=91 // pred_fallthru
          _
      $region92: #{tpu_custom_call.1} parent=5 // pred_fallthru
        _
    $region6: #{tpu_custom_call.1} parent=1 // loop_footer
      %s27 = sadd.s32 1, %s23
    $region7: #{tpu_custom_call.1} parent=1 // loop_footer_branch
      %22 = sbr.rel target = $region3
    $region8: #{tpu_custom_call.1} parent=1 // loop_exit
      _
    %1840 = vsyncpa [#allocation10], 1
    %s1841 = scalar_lea.sflag [#allocation10], 1
    %1842 = vsyncpa %s1841, 1
    %1843 = vsyncpa [#allocation13], 1
    %1844 = vsyncpa [#allocation16], 1
    %1845 = vsyncpa [#allocation11], 1
    %s1846 = scalar_lea.sflag [#allocation11], 1
    %1847 = vsyncpa %s1846, 1

</llo_original>
